<compile_context>
chip_gen: v7x
topology: tpu7x:2x2x1
jax: 0.10.0
libtpu: 0.0.40
codegen_flags: <defaults>
</compile_context>

<pallas_src>
import jax
import jax.numpy as jnp
from jax.experimental import pallas as pl
from jax.experimental.pallas import tpu as pltpu

B, S, D, H, FF = 2, 16, 32, 4, 64
DH = D // H
EPS = 1e-5                       # torch.nn.LayerNorm default eps
INV_SQRT_DH = 1.0 / (DH ** 0.5)  # score scaling: / 8**0.5
NEG_BIG = -1e30                  # finite additive-mask value

# ------------------- packed weight slab layout (rows, 128 lanes) ------------
ROW_WQKV = 0        # (D, 3D) = (32, 96)  cols 0:96   (= [Wq^T | Wk^T | Wv^T])
ROW_WO   = 32       # (D, D)  = (32, 32)  cols 0:32   (= Wout^T)
ROW_W1   = 64       # (D, FF) = (32, 64)  cols 0:64   (= W1^T)
ROW_W2   = 96       # (FF, D) = (64, 32)  cols 0:32   (= W2^T)
ROW_VEC  = 160      # 8 rows: bqkv, bo, b1, b2, g_mh, beta_mh, g_fc, beta_fc
SLAB_ROWS = 168


# ----------------------------- kernel helpers -------------------------------
def _layer_norm(v, gamma, beta):
    mu = jnp.mean(v, axis=-1, keepdims=True)
    var = jnp.mean(jnp.square(v - mu), axis=-1, keepdims=True)
    return (v - mu) * jax.lax.rsqrt(var + EPS) * gamma + beta


# --------------------------------- kernel -----------------------------------
def _make_kernel(nb):
    nbs = nb * S   # rows per grid step (batch stacked on sublanes)

    def kernel(x_ref, mask_ref, slab_ref, out_ref):
        x = x_ref[...].reshape(nbs, D)       # (nbs, D)
        addm = mask_ref[0]                   # (nbs, nbs) additive block mask

        # static slices of the packed weight slab (zero runtime cost)
        wqkv = slab_ref[ROW_WQKV:ROW_WQKV + D, 0:3 * D]
        wo_t = slab_ref[ROW_WO:ROW_WO + D, 0:D]
        w1_t = slab_ref[ROW_W1:ROW_W1 + D, 0:FF]
        w2_t = slab_ref[ROW_W2:ROW_W2 + FF, 0:D]
        vec  = slab_ref[ROW_VEC:ROW_VEC + 8, :]          # one aligned 8x128 tile
        bqkv = vec[0:1, 0:3 * D]
        bo   = vec[1:2, 0:D]
        b1   = vec[2:3, 0:FF]
        b2   = vec[3:4, 0:D]
        g_mh, be_mh = vec[4:5, 0:D], vec[5:6, 0:D]
        g_fc, be_fc = vec[6:7, 0:D], vec[7:8, 0:D]

        # ---------------- MultiHead (pre-LN; Q = K = V = x) -----------------
        xn = _layer_norm(x, g_mh, be_mh)                              # (nbs, D)
        # fused QKV projection: one full-lane-width MXU push
        qkv = jnp.dot(xn, wqkv, preferred_element_type=jnp.float32) + bqkv

        # split to heads once: static lane slices -> (H, nbs, DH)
        qs = jnp.stack([qkv[:, h * DH:(h + 1) * DH] for h in range(H)])
        ks = jnp.stack([qkv[:, D + h * DH:D + (h + 1) * DH] for h in range(H)])
        vs = jnp.stack([qkv[:, 2 * D + h * DH:2 * D + (h + 1) * DH]
                        for h in range(H)])

        sc = jnp.einsum('hqe,hke->hqk', qs, ks,
                        preferred_element_type=jnp.float32) * INV_SQRT_DH
        sc = sc + addm[None]                                          # (H,nbs,nbs)
        m = jnp.max(sc, axis=-1, keepdims=True)
        e = jnp.exp(sc - m)
        p = e * pl.reciprocal(jnp.sum(e, axis=-1, keepdims=True), approx=True)
        oh = jnp.einsum('hqk,hke->hqe', p, vs,
                        preferred_element_type=jnp.float32)           # (H,nbs,DH)

        # concat heads back onto lanes -> single output projection matmul
        oc = jnp.concatenate([oh[h] for h in range(H)], axis=-1)      # (nbs, D)
        attn = jnp.dot(oc, wo_t, preferred_element_type=jnp.float32) + bo
        y = x + attn             # residual; dropout(p=0.1) == identity (eval)

        # ---- FullyConnectedOutput: pre-LN -> 32->64 ReLU ->32 -> +residual ----
        yn = _layer_norm(y, g_fc, be_fc)
        h1 = jnp.maximum(
            jnp.dot(yn, w1_t, preferred_element_type=jnp.float32) + b1, 0.0)
        o = jnp.dot(h1, w2_t, preferred_element_type=jnp.float32) + b2
        out_ref[...] = (y + o).reshape(nb, S, D)   # dropout == identity (eval)

    return kernel


# ------------------------------ host-side prep ------------------------------
def prepare_params(params):
    """One-time packing of all weights/biases/LN params into a (168,128) slab."""
    (wq, wk, wv, bq, bk, bv, wo, bo, ln_mh, w1, b1, w2, b2, ln_fc) = params
    slab = jnp.zeros((SLAB_ROWS, 128), jnp.float32)
    slab = slab.at[ROW_WQKV:ROW_WQKV + D, 0:3 * D].set(
        jnp.concatenate([wq.T, wk.T, wv.T], axis=1))
    slab = slab.at[ROW_WO:ROW_WO + D, 0:D].set(wo.T)
    slab = slab.at[ROW_W1:ROW_W1 + D, 0:FF].set(w1.T)
    slab = slab.at[ROW_W2:ROW_W2 + FF, 0:D].set(w2.T)
    slab = slab.at[ROW_VEC + 0, 0:3 * D].set(jnp.concatenate([bq, bk, bv]))
    slab = slab.at[ROW_VEC + 1, 0:D].set(bo)
    slab = slab.at[ROW_VEC + 2, 0:FF].set(b1)
    slab = slab.at[ROW_VEC + 3, 0:D].set(b2)
    slab = slab.at[ROW_VEC + 4, 0:D].set(ln_mh[0])
    slab = slab.at[ROW_VEC + 5, 0:D].set(ln_mh[1])
    slab = slab.at[ROW_VEC + 6, 0:D].set(ln_fc[0])
    slab = slab.at[ROW_VEC + 7, 0:D].set(ln_fc[1])
    return slab


def _block_additive_mask(mask, nb):
    """(B,1,S,S) mask (1.0 == masked) -> (B//nb, nb*S, nb*S) additive mask,
    block-diagonal over the batch elements folded into one grid step."""
    addm = jnp.where(mask[:, 0] > 0.5, NEG_BIG, 0.0).astype(jnp.float32)  # (B,S,S)
    nblk = B // nb
    blocks = addm.reshape(nblk, nb, S, S)
    big = jnp.full((nblk, nb * S, nb * S), NEG_BIG, jnp.float32)
    for j in range(nb):
        big = big.at[:, j * S:(j + 1) * S, j * S:(j + 1) * S].set(blocks[:, j])
    return big


def _pick_batch_block():
    """Batch elements per grid step: fold the whole batch on 1-TC chips
    (v5e/v6e); keep one per step on 2-TC v7x so both cores get work."""
    try:
        kind = jax.devices()[0].device_kind.lower()
    except Exception:
        return B
    return 1 if "v7" in kind else B


def make_encoder_layer(nb):
    assert B % nb == 0
    nblk = B // nb
    nbs = nb * S
    call = pl.pallas_call(
        _make_kernel(nb),
        out_shape=jax.ShapeDtypeStruct((B, S, D), jnp.float32),
        grid_spec=pltpu.PrefetchScalarGridSpec(
            num_scalar_prefetch=0,
            grid=(nblk,),
            in_specs=[
                pl.BlockSpec((nb, S, D), lambda g: (g, 0, 0)),      # x
                pl.BlockSpec((1, nbs, nbs), lambda g: (g, 0, 0)),   # block mask
                pl.BlockSpec((SLAB_ROWS, 128), lambda g: (0, 0)),   # weight slab
            ],
            out_specs=pl.BlockSpec((nb, S, D), lambda g: (g, 0, 0)),
        ),
        compiler_params=pltpu.CompilerParams(
            dimension_semantics=("parallel",)),   # v7x: grid blocks across 2 TCs
    )

    @jax.jit
    def run(x, mask, slab):
        return call(x, _block_additive_mask(mask, nb), slab)

    return run


# ----------------------------- pure-JAX reference ---------------------------
def _ref_ln(v, ln):
    mu = v.mean(-1, keepdims=True)
    var = ((v - mu) ** 2).mean(-1, keepdims=True)
    return (v - mu) / jnp.sqrt(var + EPS) * ln[0] + ln[1]


def _ref_encoder(x, mask, params):
    (wq, wk, wv, bq, bk, bv, wo, bo, ln_mh, w1, b1, w2, b2, ln_fc) = params
    bsz = x.shape[0]
    clone = x
    xn = _ref_ln(x, ln_mh)
    q = xn @ wq.T + bq
    k = xn @ wk.T + bk
    v = xn @ wv.T + bv
    qh = q.reshape(bsz, S, H, DH).transpose(0, 2, 1, 3)
    kh = k.reshape(bsz, S, H, DH).transpose(0, 2, 1, 3)
    vh = v.reshape(bsz, S, H, DH).transpose(0, 2, 1, 3)
    sc = jnp.einsum('bhqd,bhkd->bhqk', qh, kh) / (DH ** 0.5)
    sc = jnp.where(mask > 0.5, -jnp.inf, sc)      # torch masked_fill semantics
    sc = jax.nn.softmax(sc, axis=-1)
    att = jnp.einsum('bhqk,bhkd->bhqd', sc, vh)
    att = att.transpose(0, 2, 1, 3).reshape(bsz, S, D)
    y = clone + (att @ wo.T + bo)
    yn = _ref_ln(y, ln_fc)
    h = jax.nn.relu(yn @ w1.T + b1)
    return y + (h @ w2.T + b2)


# ----------------------------------- main -----------------------------------
if __name__ == "__main__":
    key = jax.random.PRNGKey(0)
    ks = jax.random.split(key, 20)

    x = jax.random.normal(ks[0], (B, S, D), jnp.float32)

    # key-padding mask (1.0 == masked), broadcast over the query dimension
    lens = jnp.array([S - 3, S - 5])
    key_pad = jnp.arange(S)[None, :] >= lens[:, None]          # (B, S)
    mask = jnp.broadcast_to(key_pad[:, None, None, :],
                            (B, 1, S, S)).astype(jnp.float32)

    def init(k, shape, scale=0.1):
        return scale * jax.random.normal(k, shape, jnp.float32)

    def init_ln(k):
        g = 1.0 + 0.05 * jax.random.normal(k, (D,), jnp.float32)
        b = 0.05 * jax.random.normal(jax.random.fold_in(k, 1), (D,), jnp.float32)
        return jnp.stack([g, b])

    params = (
        init(ks[1], (D, D)), init(ks[2], (D, D)), init(ks[3], (D, D)),  # Wq Wk Wv
        init(ks[4], (D,)), init(ks[5], (D,)), init(ks[6], (D,)),        # bq bk bv
        init(ks[7], (D, D)), init(ks[8], (D,)),                         # Wout bout
        init_ln(ks[9]),                                                 # mh norm
        init(ks[10], (FF, D)), init(ks[11], (FF,)),                     # fc lin1
        init(ks[12], (D, FF)), init(ks[13], (D,)),                      # fc lin2
        init_ln(ks[14]),                                                # fc norm
    )

    slab = jax.block_until_ready(prepare_params(params))   # one-time weight prep
    run = make_encoder_layer(_pick_batch_block())

    out = jax.block_until_ready(run(x, mask, slab))

    ref = _ref_encoder(x, mask, params)
    assert out.shape == (B, S, D)
    assert bool(jnp.all(jnp.isfinite(out)))
    err = float(jnp.max(jnp.abs(out - ref)))
    assert jnp.allclose(out, ref, atol=2e-3, rtol=2e-3), err

    print("KERNEL_OK")
</pallas_src>

<mosaic_0001>
module attributes {stable_mosaic.version = 11 : i64} {
  func.func @kernel(%arg0: i32, %arg1: memref<2x16x32xf32, #tpu.memory_space<vmem>>, %arg2: memref<1x32x32xf32, #tpu.memory_space<vmem>>, %arg3: memref<168x128xf32, #tpu.memory_space<vmem>>, %arg4: memref<2x16x32xf32, #tpu.memory_space<vmem>>) attributes {dimension_semantics = [#tpu.dimension_semantics<parallel>], iteration_bounds = array<i64: 1>, scalar_prefetch = 0 : i64, scratch_operands = 0 : i64, tpu.core_type = #tpu.core_type<tc>, window_params = [{transform_indices = @transform_0, window_bounds = array<i64: 2, 16, 32>}, {transform_indices = @transform_1, window_bounds = array<i64: 1, 32, 32>}, {pipeline_mode = #tpu.pipeline_mode<synchronous>, transform_indices = @transform_2, window_bounds = array<i64: 168, 128>}, {transform_indices = @transform_3, window_bounds = array<i64: 2, 16, 32>}]} {
    %c0 = arith.constant 0 : index
    %c0_0 = arith.constant 0 : index
    %c0_1 = arith.constant 0 : index
    %0 = vector.load %arg1[%c0, %c0_0, %c0_1] : memref<2x16x32xf32, #tpu.memory_space<vmem>>, vector<2x16x32xf32>
    %1 = vector.shape_cast %0 : vector<2x16x32xf32> to vector<32x32xf32>
    %c0_2 = arith.constant 0 : index
    %c0_3 = arith.constant 0 : index
    %c0_4 = arith.constant 0 : index
    %2 = vector.load %arg2[%c0_2, %c0_3, %c0_4] : memref<1x32x32xf32, #tpu.memory_space<vmem>>, vector<1x32x32xf32>
    %3 = vector.shape_cast %2 : vector<1x32x32xf32> to vector<32x32xf32>
    %c0_5 = arith.constant 0 : index
    %c0_6 = arith.constant 0 : index
    %4 = vector.load %arg3[%c0_5, %c0_6] : memref<168x128xf32, #tpu.memory_space<vmem>>, vector<32x96xf32>
    %c32 = arith.constant 32 : index
    %c0_7 = arith.constant 0 : index
    %5 = vector.load %arg3[%c32, %c0_7] : memref<168x128xf32, #tpu.memory_space<vmem>>, vector<32x32xf32>
    %c64 = arith.constant 64 : index
    %c0_8 = arith.constant 0 : index
    %6 = vector.load %arg3[%c64, %c0_8] : memref<168x128xf32, #tpu.memory_space<vmem>>, vector<32x64xf32>
    %c96 = arith.constant 96 : index
    %c0_9 = arith.constant 0 : index
    %7 = vector.load %arg3[%c96, %c0_9] : memref<168x128xf32, #tpu.memory_space<vmem>>, vector<64x32xf32>
    %c160 = arith.constant 160 : index
    %c0_10 = arith.constant 0 : index
    %8 = vector.load %arg3[%c160, %c0_10] : memref<168x128xf32, #tpu.memory_space<vmem>>, vector<8x128xf32>
    %9 = vector.extract_strided_slice %8 {offsets = [0, 0], sizes = [1, 96], strides = [1, 1]} : vector<8x128xf32> to vector<1x96xf32>
    %10 = vector.extract_strided_slice %8 {offsets = [1, 0], sizes = [1, 32], strides = [1, 1]} : vector<8x128xf32> to vector<1x32xf32>
    %11 = vector.extract_strided_slice %8 {offsets = [2, 0], sizes = [1, 64], strides = [1, 1]} : vector<8x128xf32> to vector<1x64xf32>
    %12 = vector.extract_strided_slice %8 {offsets = [3, 0], sizes = [1, 32], strides = [1, 1]} : vector<8x128xf32> to vector<1x32xf32>
    %13 = vector.extract_strided_slice %8 {offsets = [4, 0], sizes = [1, 32], strides = [1, 1]} : vector<8x128xf32> to vector<1x32xf32>
    %14 = vector.extract_strided_slice %8 {offsets = [5, 0], sizes = [1, 32], strides = [1, 1]} : vector<8x128xf32> to vector<1x32xf32>
    %15 = vector.extract_strided_slice %8 {offsets = [6, 0], sizes = [1, 32], strides = [1, 1]} : vector<8x128xf32> to vector<1x32xf32>
    %16 = vector.extract_strided_slice %8 {offsets = [7, 0], sizes = [1, 32], strides = [1, 1]} : vector<8x128xf32> to vector<1x32xf32>
    %cst = arith.constant dense<0.000000e+00> : vector<32xf32>
    %17 = vector.multi_reduction <add>, %1, %cst [1] : vector<32x32xf32> to vector<32xf32>
    %18 = vector.shape_cast %17 : vector<32xf32> to vector<32x1xf32>
    %cst_11 = arith.constant 3.200000e+01 : f32
    %19 = vector.broadcast %cst_11 : f32 to vector<32x1xf32>
    %20 = arith.divf %18, %19 : vector<32x1xf32>
    %21 = vector.broadcast %20 : vector<32x1xf32> to vector<32x32xf32>
    %22 = arith.subf %1, %21 : vector<32x32xf32>
    %23 = arith.mulf %22, %22 : vector<32x32xf32>
    %cst_12 = arith.constant dense<0.000000e+00> : vector<32xf32>
    %24 = vector.multi_reduction <add>, %23, %cst_12 [1] : vector<32x32xf32> to vector<32xf32>
    %25 = vector.shape_cast %24 : vector<32xf32> to vector<32x1xf32>
    %cst_13 = arith.constant 3.200000e+01 : f32
    %26 = vector.broadcast %cst_13 : f32 to vector<32x1xf32>
    %27 = arith.divf %25, %26 : vector<32x1xf32>
    %28 = vector.broadcast %20 : vector<32x1xf32> to vector<32x32xf32>
    %29 = arith.subf %1, %28 : vector<32x32xf32>
    %cst_14 = arith.constant 9.99999974E-6 : f32
    %30 = vector.broadcast %cst_14 : f32 to vector<32x1xf32>
    %31 = arith.addf %27, %30 : vector<32x1xf32>
    %32 = math.rsqrt %31 : vector<32x1xf32>
    %33 = vector.broadcast %32 : vector<32x1xf32> to vector<32x32xf32>
    %34 = arith.mulf %29, %33 : vector<32x32xf32>
    %35 = vector.broadcast %13 : vector<1x32xf32> to vector<32x32xf32>
    %36 = arith.mulf %34, %35 : vector<32x32xf32>
    %37 = vector.broadcast %14 : vector<1x32xf32> to vector<32x32xf32>
    %38 = arith.addf %36, %37 : vector<32x32xf32>
    %cst_15 = arith.constant dense<0.000000e+00> : vector<32x96xf32>
    %39 = tpu.matmul %38, %4, %cst_15 {dimension_numbers = #tpu.dot_dimension_numbers<[1], [0], [0], [1], [0, 0, 1, 1], [], []>} : vector<32x32xf32>, vector<32x96xf32>, vector<32x96xf32> -> vector<32x96xf32>
    %40 = vector.broadcast %9 : vector<1x96xf32> to vector<32x96xf32>
    %41 = arith.addf %39, %40 : vector<32x96xf32>
    %42 = vector.extract_strided_slice %41 {offsets = [0, 0], sizes = [32, 8], strides = [1, 1]} : vector<32x96xf32> to vector<32x8xf32>
    %43 = vector.extract_strided_slice %41 {offsets = [0, 8], sizes = [32, 8], strides = [1, 1]} : vector<32x96xf32> to vector<32x8xf32>
    %44 = vector.extract_strided_slice %41 {offsets = [0, 16], sizes = [32, 8], strides = [1, 1]} : vector<32x96xf32> to vector<32x8xf32>
    %45 = vector.extract_strided_slice %41 {offsets = [0, 24], sizes = [32, 8], strides = [1, 1]} : vector<32x96xf32> to vector<32x8xf32>
    %46 = vector.shape_cast %42 : vector<32x8xf32> to vector<1x32x8xf32>
    %47 = vector.shape_cast %43 : vector<32x8xf32> to vector<1x32x8xf32>
    %48 = vector.shape_cast %44 : vector<32x8xf32> to vector<1x32x8xf32>
    %49 = vector.shape_cast %45 : vector<32x8xf32> to vector<1x32x8xf32>
    %50 = tpu.concatenate %46, %47, %48, %49 in 0 : vector<1x32x8xf32>, vector<1x32x8xf32>, vector<1x32x8xf32>, vector<1x32x8xf32> -> vector<4x32x8xf32>
    %51 = vector.extract_strided_slice %41 {offsets = [0, 32], sizes = [32, 8], strides = [1, 1]} : vector<32x96xf32> to vector<32x8xf32>
    %52 = vector.extract_strided_slice %41 {offsets = [0, 40], sizes = [32, 8], strides = [1, 1]} : vector<32x96xf32> to vector<32x8xf32>
    %53 = vector.extract_strided_slice %41 {offsets = [0, 48], sizes = [32, 8], strides = [1, 1]} : vector<32x96xf32> to vector<32x8xf32>
    %54 = vector.extract_strided_slice %41 {offsets = [0, 56], sizes = [32, 8], strides = [1, 1]} : vector<32x96xf32> to vector<32x8xf32>
    %55 = vector.shape_cast %51 : vector<32x8xf32> to vector<1x32x8xf32>
    %56 = vector.shape_cast %52 : vector<32x8xf32> to vector<1x32x8xf32>
    %57 = vector.shape_cast %53 : vector<32x8xf32> to vector<1x32x8xf32>
    %58 = vector.shape_cast %54 : vector<32x8xf32> to vector<1x32x8xf32>
    %59 = tpu.concatenate %55, %56, %57, %58 in 0 : vector<1x32x8xf32>, vector<1x32x8xf32>, vector<1x32x8xf32>, vector<1x32x8xf32> -> vector<4x32x8xf32>
    %60 = vector.extract_strided_slice %41 {offsets = [0, 64], sizes = [32, 8], strides = [1, 1]} : vector<32x96xf32> to vector<32x8xf32>
    %61 = vector.extract_strided_slice %41 {offsets = [0, 72], sizes = [32, 8], strides = [1, 1]} : vector<32x96xf32> to vector<32x8xf32>
    %62 = vector.extract_strided_slice %41 {offsets = [0, 80], sizes = [32, 8], strides = [1, 1]} : vector<32x96xf32> to vector<32x8xf32>
    %63 = vector.extract_strided_slice %41 {offsets = [0, 88], sizes = [32, 8], strides = [1, 1]} : vector<32x96xf32> to vector<32x8xf32>
    %64 = vector.shape_cast %60 : vector<32x8xf32> to vector<1x32x8xf32>
    %65 = vector.shape_cast %61 : vector<32x8xf32> to vector<1x32x8xf32>
    %66 = vector.shape_cast %62 : vector<32x8xf32> to vector<1x32x8xf32>
    %67 = vector.shape_cast %63 : vector<32x8xf32> to vector<1x32x8xf32>
    %68 = tpu.concatenate %64, %65, %66, %67 in 0 : vector<1x32x8xf32>, vector<1x32x8xf32>, vector<1x32x8xf32>, vector<1x32x8xf32> -> vector<4x32x8xf32>
    "tpu.trace_start"() <{level = 10 : i32, message = "hqe,hke->hqk"}> : () -> ()
    %cst_16 = arith.constant dense<0.000000e+00> : vector<4x32x32xf32>
    %69 = tpu.matmul %50, %59, %cst_16 {dimension_numbers = #tpu.dot_dimension_numbers<[2], [2], [1], [1], [0, 0, 0, 1, 1, 1], [0], [0]>} : vector<4x32x8xf32>, vector<4x32x8xf32>, vector<4x32x32xf32> -> vector<4x32x32xf32>
    "tpu.trace_stop"() : () -> ()
    %cst_17 = arith.constant 0.353553385 : f32
    %70 = vector.broadcast %cst_17 : f32 to vector<4x32x32xf32>
    %71 = arith.mulf %69, %70 : vector<4x32x32xf32>
    %72 = vector.shape_cast %3 : vector<32x32xf32> to vector<1x32x32xf32>
    %73 = vector.broadcast %72 : vector<1x32x32xf32> to vector<4x32x32xf32>
    %74 = arith.addf %71, %73 : vector<4x32x32xf32>
    %cst_18 = arith.constant dense<0xFF800000> : vector<4x32xf32>
    %75 = vector.multi_reduction <maximumf>, %74, %cst_18 [2] : vector<4x32x32xf32> to vector<4x32xf32>
    %76 = vector.shape_cast %75 : vector<4x32xf32> to vector<4x32x1xf32>
    %77 = vector.broadcast %76 : vector<4x32x1xf32> to vector<4x32x32xf32>
    %78 = arith.subf %74, %77 : vector<4x32x32xf32>
    %79 = math.exp %78 : vector<4x32x32xf32>
    %cst_19 = arith.constant dense<0.000000e+00> : vector<4x32xf32>
    %80 = vector.multi_reduction <add>, %79, %cst_19 [2] : vector<4x32x32xf32> to vector<4x32xf32>
    %81 = vector.shape_cast %80 : vector<4x32xf32> to vector<4x32x1xf32>
    %82 = tpu.reciprocal %81 {approx = true} : vector<4x32x1xf32> -> vector<4x32x1xf32>
    %83 = vector.broadcast %82 : vector<4x32x1xf32> to vector<4x32x32xf32>
    %84 = arith.mulf %79, %83 : vector<4x32x32xf32>
    "tpu.trace_start"() <{level = 10 : i32, message = "hqk,hke->hqe"}> : () -> ()
    %cst_20 = arith.constant dense<0.000000e+00> : vector<4x32x8xf32>
    %85 = tpu.matmul %84, %68, %cst_20 {dimension_numbers = #tpu.dot_dimension_numbers<[2], [1], [1], [2], [0, 0, 0, 1, 1, 2], [0], [0]>} : vector<4x32x32xf32>, vector<4x32x8xf32>, vector<4x32x8xf32> -> vector<4x32x8xf32>
    "tpu.trace_stop"() : () -> ()
    %86 = vector.extract_strided_slice %85 {offsets = [0, 0, 0], sizes = [1, 32, 8], strides = [1, 1, 1]} : vector<4x32x8xf32> to vector<1x32x8xf32>
    %87 = vector.shape_cast %86 : vector<1x32x8xf32> to vector<32x8xf32>
    %88 = vector.extract_strided_slice %85 {offsets = [1, 0, 0], sizes = [1, 32, 8], strides = [1, 1, 1]} : vector<4x32x8xf32> to vector<1x32x8xf32>
    %89 = vector.shape_cast %88 : vector<1x32x8xf32> to vector<32x8xf32>
    %90 = vector.extract_strided_slice %85 {offsets = [2, 0, 0], sizes = [1, 32, 8], strides = [1, 1, 1]} : vector<4x32x8xf32> to vector<1x32x8xf32>
    %91 = vector.shape_cast %90 : vector<1x32x8xf32> to vector<32x8xf32>
    %92 = vector.extract_strided_slice %85 {offsets = [3, 0, 0], sizes = [1, 32, 8], strides = [1, 1, 1]} : vector<4x32x8xf32> to vector<1x32x8xf32>
    %93 = vector.shape_cast %92 : vector<1x32x8xf32> to vector<32x8xf32>
    %94 = tpu.concatenate %87, %89, %91, %93 in 1 : vector<32x8xf32>, vector<32x8xf32>, vector<32x8xf32>, vector<32x8xf32> -> vector<32x32xf32>
    %cst_21 = arith.constant dense<0.000000e+00> : vector<32x32xf32>
    %95 = tpu.matmul %94, %5, %cst_21 {dimension_numbers = #tpu.dot_dimension_numbers<[1], [0], [0], [1], [0, 0, 1, 1], [], []>} : vector<32x32xf32>, vector<32x32xf32>, vector<32x32xf32> -> vector<32x32xf32>
    %96 = vector.broadcast %10 : vector<1x32xf32> to vector<32x32xf32>
    %97 = arith.addf %95, %96 : vector<32x32xf32>
    %98 = arith.addf %1, %97 : vector<32x32xf32>
    %cst_22 = arith.constant dense<0.000000e+00> : vector<32xf32>
    %99 = vector.multi_reduction <add>, %98, %cst_22 [1] : vector<32x32xf32> to vector<32xf32>
    %100 = vector.shape_cast %99 : vector<32xf32> to vector<32x1xf32>
    %cst_23 = arith.constant 3.200000e+01 : f32
    %101 = vector.broadcast %cst_23 : f32 to vector<32x1xf32>
    %102 = arith.divf %100, %101 : vector<32x1xf32>
    %103 = vector.broadcast %102 : vector<32x1xf32> to vector<32x32xf32>
    %104 = arith.subf %98, %103 : vector<32x32xf32>
    %105 = arith.mulf %104, %104 : vector<32x32xf32>
    %cst_24 = arith.constant dense<0.000000e+00> : vector<32xf32>
    %106 = vector.multi_reduction <add>, %105, %cst_24 [1] : vector<32x32xf32> to vector<32xf32>
    %107 = vector.shape_cast %106 : vector<32xf32> to vector<32x1xf32>
    %cst_25 = arith.constant 3.200000e+01 : f32
    %108 = vector.broadcast %cst_25 : f32 to vector<32x1xf32>
    %109 = arith.divf %107, %108 : vector<32x1xf32>
    %110 = vector.broadcast %102 : vector<32x1xf32> to vector<32x32xf32>
    %111 = arith.subf %98, %110 : vector<32x32xf32>
    %cst_26 = arith.constant 9.99999974E-6 : f32
    %112 = vector.broadcast %cst_26 : f32 to vector<32x1xf32>
    %113 = arith.addf %109, %112 : vector<32x1xf32>
    %114 = math.rsqrt %113 : vector<32x1xf32>
    %115 = vector.broadcast %114 : vector<32x1xf32> to vector<32x32xf32>
    %116 = arith.mulf %111, %115 : vector<32x32xf32>
    %117 = vector.broadcast %15 : vector<1x32xf32> to vector<32x32xf32>
    %118 = arith.mulf %116, %117 : vector<32x32xf32>
    %119 = vector.broadcast %16 : vector<1x32xf32> to vector<32x32xf32>
    %120 = arith.addf %118, %119 : vector<32x32xf32>
    %cst_27 = arith.constant dense<0.000000e+00> : vector<32x64xf32>
    %121 = tpu.matmul %120, %6, %cst_27 {dimension_numbers = #tpu.dot_dimension_numbers<[1], [0], [0], [1], [0, 0, 1, 1], [], []>} : vector<32x32xf32>, vector<32x64xf32>, vector<32x64xf32> -> vector<32x64xf32>
    %122 = vector.broadcast %11 : vector<1x64xf32> to vector<32x64xf32>
    %123 = arith.addf %121, %122 : vector<32x64xf32>
    %cst_28 = arith.constant 0.000000e+00 : f32
    %124 = vector.broadcast %cst_28 : f32 to vector<32x64xf32>
    %125 = arith.maximumf %123, %124 : vector<32x64xf32>
    %cst_29 = arith.constant dense<0.000000e+00> : vector<32x32xf32>
    %126 = tpu.matmul %125, %7, %cst_29 {dimension_numbers = #tpu.dot_dimension_numbers<[1], [0], [0], [1], [0, 0, 1, 1], [], []>} : vector<32x64xf32>, vector<64x32xf32>, vector<32x32xf32> -> vector<32x32xf32>
    %127 = vector.broadcast %12 : vector<1x32xf32> to vector<32x32xf32>
    %128 = arith.addf %126, %127 : vector<32x32xf32>
    %129 = arith.addf %98, %128 : vector<32x32xf32>
    %130 = vector.shape_cast %129 : vector<32x32xf32> to vector<2x16x32xf32>
    %c0_30 = arith.constant 0 : index
    %c0_31 = arith.constant 0 : index
    %c0_32 = arith.constant 0 : index
    %131 = vector.load %arg4[%c0_30, %c0_31, %c0_32] : memref<2x16x32xf32, #tpu.memory_space<vmem>>, vector<2x16x32xf32>
    tpu.vector_store %arg4[%c0_30, %c0_31, %c0_32], %130 {strides = array<i32>} : memref<2x16x32xf32, #tpu.memory_space<vmem>>, vector<2x16x32xf32>,
    return
  }
  func.func @transform_0(%arg0: i32) -> (i32, i32, i32) {
    %c0_i32 = arith.constant 0 : i32
    %c0_i32_0 = arith.constant 0 : i32
    %c0_i32_1 = arith.constant 0 : i32
    return %arg0, %c0_i32, %c0_i32_0 : i32, i32, i32
  }
  func.func @transform_1(%arg0: i32) -> (i32, i32, i32) {
    %c0_i32 = arith.constant 0 : i32
    %c0_i32_0 = arith.constant 0 : i32
    %c0_i32_1 = arith.constant 0 : i32
    return %arg0, %c0_i32, %c0_i32_0 : i32, i32, i32
  }
  func.func @transform_2(%arg0: i32) -> (i32, i32) {
    %c0_i32 = arith.constant 0 : i32
    %c0_i32_0 = arith.constant 0 : i32
    %c0_i32_1 = arith.constant 0 : i32
    return %c0_i32, %c0_i32_0 : i32, i32
  }
  func.func @transform_3(%arg0: i32) -> (i32, i32, i32) {
    %c0_i32 = arith.constant 0 : i32
    %c0_i32_0 = arith.constant 0 : i32
    %c0_i32_1 = arith.constant 0 : i32
    return %arg0, %c0_i32, %c0_i32_0 : i32, i32, i32
  }
}

</mosaic_0001>

<llo_original>
// kernel: run.1
$region0: #{run.1}
  #allocation0 [shape = 'u32[]', space=smem, size = 0x4, offset = 0x4, fixed_abs, tag = 'smem constant byte address 0x4 - core index']
  #allocation1 [shape = 'u32[144,128]{1,0:T(1,128)}', space=vmem, size = 0x12000, scoped, tag = 'internal scratch']
  %s0 = inlined_call_operand.vmem [shape: f32[2,16,32], index: 0, kind: input, shape index: {}]
  %s1 = inlined_call_operand.vmem [shape: f32[1,32,32], index: 1, kind: input, shape index: {}]
  %s2 = inlined_call_operand.vmem [shape: f32[168,128], index: 2, kind: input, shape index: {}]
  %s3 = inlined_call_operand.hbm [shape: f32[2,16,32], index: 3, kind: output, shape index: {}]
  %s4 = sld [smem:[#allocation0]]
  $region22: #{run.1} parent=0
    _
  %s6 = ssub.s32 1, %s4
  %s7 = scalar_select 0, %s6, %s4
  $region1: #{run.1} parent=0
    #allocation2 [shape = 'u8[16384]{0}', space=vmem, size = 0x4000, scoped, tag = 'output window, operand 0, single buffered']
    #allocation3 [shape = 's32[1]{0}', space=sflag, size = 0x4, scoped, tag = 'scoped memory for run.1']
    %8 = vsyncpa [#allocation3], 0
    // Predicated region
    $region2: #{run.1} parent=1 // pred_check
      _
    $region3: #{run.1} parent=1 // pred_check_branch
      %10 = sbr.rel (0) target = $region5
    $region4: #{run.1} parent=1 // pred_region
      _
    $region5: #{run.1} parent=1 // pred_fallthru
      _
    // Predicated region
    $region6: #{run.1} parent=1 // pred_check
      _
    $region7: #{run.1} parent=1 // pred_check_branch
      %12 = sbr.rel (0) target = $region9
    $region8: #{run.1} parent=1 // pred_region
      _
    $region9: #{run.1} parent=1 // pred_fallthru
      _
    // Predicated region
    $region10: #{run.1} parent=1 // pred_check
      _
    $region11: #{run.1} parent=1 // pred_check_branch
      %14 = sbr.rel (0) target = $region13
    $region12: #{run.1} parent=1 // pred_region
      _
    $region13: #{run.1} parent=1 // pred_fallthru
      _
    %v15 = vld [vmem:[%s0] sm:$0xff]
    %v16 = vld [vmem:[%s0 + $0x8] sm:$0xff]
    %v17 = vld [vmem:[%s0 + $0x10] sm:$0xff]
    %v18 = vld [vmem:[%s0 + $0x18] sm:$0xff]
    %v19 = vld [vmem:[%s1] sm:$0xff]
    %v20 = vld [vmem:[%s1 + $0x8] sm:$0xff]
    %v21 = vld [vmem:[%s1 + $0x10] sm:$0xff]
    %v22 = vld [vmem:[%s1 + $0x18] sm:$0xff]
    %v23 = vld [vmem:[%s2] sm:$0xff]
    %v24 = vld [vmem:[%s2 + $0x8] sm:$0xff]
    %v25 = vld [vmem:[%s2 + $0x10] sm:$0xff]
    %v26 = vld [vmem:[%s2 + $0x18] sm:$0xff]
    %v27 = vld [vmem:[%s2 + $0x20] sm:$0xff]
    %v28 = vld [vmem:[%s2 + $0x28] sm:$0xff]
    %v29 = vld [vmem:[%s2 + $0x30] sm:$0xff]
    %v30 = vld [vmem:[%s2 + $0x38] sm:$0xff]
    %v31 = vld [vmem:[%s2 + $0x40] sm:$0xff]
    %v32 = vld [vmem:[%s2 + $0x48] sm:$0xff]
    %v33 = vld [vmem:[%s2 + $0x50] sm:$0xff]
    %v34 = vld [vmem:[%s2 + $0x58] sm:$0xff]
    %v35 = vld [vmem:[%s2 + $0x60] sm:$0xff]
    %v36 = vld [vmem:[%s2 + $0x68] sm:$0xff]
    %v37 = vld [vmem:[%s2 + $0x70] sm:$0xff]
    %v38 = vld [vmem:[%s2 + $0x78] sm:$0xff]
    %v39 = vld [vmem:[%s2 + $0x80] sm:$0xff]
    %v40 = vld [vmem:[%s2 + $0x88] sm:$0xff]
    %v41 = vld [vmem:[%s2 + $0x90] sm:$0xff]
    %v42 = vld [vmem:[%s2 + $0x98] sm:$0xff]
    %v43 = vld [vmem:[%s2 + $0xa0] sm:$0xff]
    %vm44 = vcmask 261120
    %v45 = vsel %vm44, %v15, 0.0
    %46 = vadd.xlane.f32.xlu0 %v45
    %v47 = vpop.xlane.xlu0 %46
    %v48 = vsel %vm44, %v16, 0.0
    %49 = vadd.xlane.f32.xlu0 %v48
    %v50 = vpop.xlane.xlu0 %49
    %v51 = vsel %vm44, %v17, 0.0
    %52 = vadd.xlane.f32.xlu0 %v51
    %v53 = vpop.xlane.xlu0 %52
    %v54 = vsel %vm44, %v18, 0.0
    %55 = vadd.xlane.f32.xlu0 %v54
    %v56 = vpop.xlane.xlu0 %55
    %v57 = vrcp.pop 32.0
    %v58 = vmul.f32 %v47, %v57
    %v59 = vmul.f32 %v50, %v57
    %v60 = vmul.f32 %v53, %v57
    %v61 = vmul.f32 %v56, %v57
    %v62 = vsub.f32 %v15, %v58
    %v63 = vsub.f32 %v16, %v59
    %v64 = vsub.f32 %v17, %v60
    %v65 = vsub.f32 %v18, %v61
    %v66 = vmul.f32 %v62, %v62
    %v67 = vmul.f32 %v63, %v63
    %v68 = vmul.f32 %v64, %v64
    %v69 = vmul.f32 %v65, %v65
    %v70 = vsel %vm44, %v66, 0.0
    %71 = vadd.xlane.f32.xlu0 %v70
    %v72 = vpop.xlane.xlu0 %71
    %v73 = vsel %vm44, %v67, 0.0
    %74 = vadd.xlane.f32.xlu0 %v73
    %v75 = vpop.xlane.xlu0 %74
    %v76 = vsel %vm44, %v68, 0.0
    %77 = vadd.xlane.f32.xlu0 %v76
    %v78 = vpop.xlane.xlu0 %77
    %v79 = vsel %vm44, %v69, 0.0
    %80 = vadd.xlane.f32.xlu0 %v79
    %v81 = vpop.xlane.xlu0 %80
    %v82 = vmul.f32 %v72, %v57
    %v83 = vmul.f32 %v75, %v57
    %v84 = vmul.f32 %v78, %v57
    %v85 = vmul.f32 %v81, %v57
    %v86 = vadd.f32 %v82, 1e-05
    %v87 = vadd.f32 %v83, 1e-05
    %v88 = vadd.f32 %v84, 1e-05
    %v89 = vadd.f32 %v85, 1e-05
    %v90 = vrsqrt.pop %v86
    %v91 = vrsqrt.pop %v87
    %v92 = vrsqrt.pop %v88
    %v93 = vrsqrt.pop %v89
    %v94 = vmul.f32 %v62, %v90
    %v95 = vmul.f32 %v63, %v91
    %v96 = vmul.f32 %v64, %v92
    %v97 = vmul.f32 %v65, %v93
    %v98 = vlaneseq
    %v99 = vshrl.u32 %v98, 7
    %v100 = vsub.s32 4, %v99
    %v101 = vrot.slane %v43, %v100
    %v102 = vmul.f32 %v94, %v101
    %v103 = vmul.f32 %v95, %v101
    %v104 = vmul.f32 %v96, %v101
    %v105 = vmul.f32 %v97, %v101
    %v106 = vlaneseq
    %v107 = vshrl.u32 %v106, 7
    %v108 = vsub.s32 5, %v107
    %v109 = vrot.slane %v43, %v108
    %v110 = vadd.f32 %v102, %v109
    %v111 = vadd.f32 %v103, %v109
    %v112 = vadd.f32 %v104, %v109
    %v113 = vadd.f32 %v105, %v109
    %v114 = vlaneseq
    %v115 = vshrl.u32 %v114, 7
    %v116 = vsub.s32 0, %v115
    %v117 = vrot.slane %v43, %v116
    %v119 = vsel %vm44, %v110, 0
    %v122 = vsel %vm44, %v111, 0
    %v125 = vsel %vm44, %v112, 0
    %v128 = vsel %vm44, %v113, 0
    %130 = vmatprep.subr.mxu0 0.0
    %131 = vmatpush1.msra.mxu0 %v23
    %132 = vmatprep.subr.mxu0 0.0
    %133 = vmatpush1.msra.mxu0 %v24
    %134 = vmatprep.subr.mxu0 0.0
    %135 = vmatpush1.msra.mxu0 %v25
    %136 = vmatprep.subr.mxu0 0.0
    %137 = vmatpush1.msra.mxu0 %v26
    %138 = vmatprep.subr.mxu0 0.0
    %139 = vmatpush1.msra.mxu0 0.0
    %140 = vmatprep.subr.mxu0 0.0
    %141 = vmatpush1.msra.mxu0 0.0
    %142 = vmatprep.subr.mxu0 0.0
    %143 = vmatpush1.msra.mxu0 0.0
    %144 = vmatprep.subr.mxu0 0.0
    %145 = vmatpush1.msra.mxu0 0.0
    %146 = vmatprep.subr.mxu0 0.0
    %147 = vmatpush1.msra.mxu0 0.0
    %148 = vmatprep.subr.mxu0 0.0
    %149 = vmatpush1.msra.mxu0 0.0
    %150 = vmatprep.subr.mxu0 0.0
    %151 = vmatpush1.msra.mxu0 0.0
    %152 = vmatprep.subr.mxu0 0.0
    %153 = vmatpush1.msra.mxu0 0.0
    %154 = vmatprep.subr.mxu0 0.0
    %155 = vmatpush1.msra.mxu0 0.0
    %156 = vmatprep.subr.mxu0 0.0
    %157 = vmatpush1.msra.mxu0 0.0
    %158 = vmatprep.subr.mxu0 0.0
    %159 = vmatpush1.msra.mxu0 0.0
    %160 = vmatprep.subr.mxu0 0.0
    %161 = vmatpush1.msra.mxu0 0.0
    %162 = vmatprep.subr.mxu0 0.0
    %163 = vmatpush1.msra.mxu0 0.0
    %164 = vmatprep.subr.mxu0 0.0
    %165 = vmatpush1.msra.mxu0 0.0
    %166 = vmatprep.subr.mxu0 0.0
    %167 = vmatpush1.msra.mxu0 0.0
    %168 = vmatprep.subr.mxu0 0.0
    %169 = vmatpush1.msra.mxu0 0.0
    %170 = vmatprep.subr.mxu0 0.0
    %171 = vmatpush1.msra.mxu0 0.0
    %172 = vmatprep.subr.mxu0 0.0
    %173 = vmatpush1.msra.mxu0 0.0
    %174 = vmatprep.subr.mxu0 0.0
    %175 = vmatpush1.msra.mxu0 0.0
    %176 = vmatprep.subr.mxu0 0.0
    %177 = vmatpush1.msra.mxu0 0.0
    %178 = vmatprep.subr.mxu0 0.0
    %179 = vmatpush1.msra.mxu0 0.0
    %180 = vmatprep.subr.mxu0 0.0
    %181 = vmatpush1.msra.mxu0 0.0
    %182 = vmatprep.subr.mxu0 0.0
    %183 = vmatpush1.msra.mxu0 0.0
    %184 = vmatprep.subr.mxu0 0.0
    %185 = vmatpush1.msra.mxu0 0.0
    %186 = vmatprep.subr.mxu0 0.0
    %187 = vmatpush1.msra.mxu0 0.0
    %188 = vmatprep.subr.mxu0 0.0
    %189 = vmatpush1.msra.mxu0 0.0
    %190 = vmatprep.subr.mxu0 0.0
    %191 = vmatpush1.msra.mxu0 0.0
    %192 = vmatprep.subr.mxu0 0.0
    %193 = vmatpush1.msra.mxu0 0.0
    %194 = vmatprep.mubr.f32.mxu0 0.0
    %195 = vmatmul.mubr.f32.gmra.mrb[0].mxu0 %v119
    %v196 = vpop.f32.mrb[0].mxu0
    %v197 = vadd.f32 %v117, %v196
    %v198 = vpop.f32.mrb[0].mxu0
    %199 = vmatprep.mubr.f32.mxu0 0.0
    %200 = vmatmul.mubr.f32.gmra.mrb[0].mxu0 %v122
    %v201 = vpop.f32.mrb[0].mxu0
    %v202 = vadd.f32 %v117, %v201
    %v203 = vpop.f32.mrb[0].mxu0
    %204 = vmatprep.mubr.f32.mxu0 0.0
    %205 = vmatmul.mubr.f32.gmra.mrb[0].mxu0 %v125
    %v206 = vpop.f32.mrb[0].mxu0
    %v207 = vadd.f32 %v117, %v206
    %v208 = vpop.f32.mrb[0].mxu0
    %209 = vmatprep.mubr.f32.mxu0 0.0
    %210 = vmatmul.mubr.f32.gmra.mrb[0].mxu0 %v128
    %v211 = vpop.f32.mrb[0].mxu0
    %v212 = vadd.f32 %v117, %v211
    %v213 = vpop.f32.mrb[0].mxu0
    %214 = vdwg.mxu0
    %219 = vrot.lane.b32.xlu0 %v197, 120
    %v220 = vpop.permute.xlu0 %219
    %221 = vrot.lane.b32.xlu0 %v202, 120
    %v222 = vpop.permute.xlu0 %221
    %223 = vrot.lane.b32.xlu0 %v207, 120
    %v224 = vpop.permute.xlu0 %223
    %225 = vrot.lane.b32.xlu0 %v212, 120
    %v226 = vpop.permute.xlu0 %225
    %227 = vrot.lane.b32.xlu0 %v197, 112
    %v228 = vpop.permute.xlu0 %227
    %229 = vrot.lane.b32.xlu0 %v202, 112
    %v230 = vpop.permute.xlu0 %229
    %231 = vrot.lane.b32.xlu0 %v207, 112
    %v232 = vpop.permute.xlu0 %231
    %233 = vrot.lane.b32.xlu0 %v212, 112
    %v234 = vpop.permute.xlu0 %233
    %235 = vrot.lane.b32.xlu0 %v197, 104
    %v236 = vpop.permute.xlu0 %235
    %237 = vrot.lane.b32.xlu0 %v202, 104
    %v238 = vpop.permute.xlu0 %237
    %239 = vrot.lane.b32.xlu0 %v207, 104
    %v240 = vpop.permute.xlu0 %239
    %241 = vrot.lane.b32.xlu0 %v212, 104
    %v242 = vpop.permute.xlu0 %241
    %243 = vrot.lane.b32.xlu0 %v197, 96
    %v244 = vpop.permute.xlu0 %243
    %245 = vrot.lane.b32.xlu0 %v202, 96
    %v246 = vpop.permute.xlu0 %245
    %247 = vrot.lane.b32.xlu0 %v207, 96
    %v248 = vpop.permute.xlu0 %247
    %249 = vrot.lane.b32.xlu0 %v212, 96
    %v250 = vpop.permute.xlu0 %249
    %vm251 = vcmask 64512
    %v252 = vsel %vm251, %v197, 0
    %v254 = vsel %vm251, %v202, 0
    %v256 = vsel %vm251, %v207, 0
    %v258 = vsel %vm251, %v212, 0
    %v260 = vsel %vm251, %v244, 0
    %v262 = vsel %vm251, %v246, 0
    %v264 = vsel %vm251, %v248, 0
    %v266 = vsel %vm251, %v250, 0
    %268 = vmatprep.subr.mxu0 0.0
    %269 = vmatpush1.xpose.msra.mxu0 %v260
    %270 = vmatprep.subr.mxu0 0.0
    %271 = vmatpush1.xpose.msra.mxu0 %v262
    %272 = vmatprep.subr.mxu0 0.0
    %273 = vmatpush1.xpose.msra.mxu0 %v264
    %274 = vmatprep.subr.mxu0 0.0
    %275 = vmatpush1.xpose.msra.mxu0 %v266
    %276 = vmatprep.subr.mxu0 0.0
    %277 = vmatpush1.xpose.msra.mxu0 0.0
    %278 = vmatprep.subr.mxu0 0.0
    %279 = vmatpush1.xpose.msra.mxu0 0.0
    %280 = vmatprep.subr.mxu0 0.0
    %281 = vmatpush1.xpose.msra.mxu0 0.0
    %282 = vmatprep.subr.mxu0 0.0
    %283 = vmatpush1.xpose.msra.mxu0 0.0
    %284 = vmatprep.subr.mxu0 0.0
    %285 = vmatpush1.xpose.msra.mxu0 0.0
    %286 = vmatprep.subr.mxu0 0.0
    %287 = vmatpush1.xpose.msra.mxu0 0.0
    %288 = vmatprep.subr.mxu0 0.0
    %289 = vmatpush1.xpose.msra.mxu0 0.0
    %290 = vmatprep.subr.mxu0 0.0
    %291 = vmatpush1.xpose.msra.mxu0 0.0
    %292 = vmatprep.subr.mxu0 0.0
    %293 = vmatpush1.xpose.msra.mxu0 0.0
    %294 = vmatprep.subr.mxu0 0.0
    %295 = vmatpush1.xpose.msra.mxu0 0.0
    %296 = vmatprep.subr.mxu0 0.0
    %297 = vmatpush1.xpose.msra.mxu0 0.0
    %298 = vmatprep.subr.mxu0 0.0
    %299 = vmatpush1.xpose.msra.mxu0 0.0
    %300 = vmatprep.subr.mxu0 0.0
    %301 = vmatpush1.xpose.msra.mxu0 0.0
    %302 = vmatprep.subr.mxu0 0.0
    %303 = vmatpush1.xpose.msra.mxu0 0.0
    %304 = vmatprep.subr.mxu0 0.0
    %305 = vmatpush1.xpose.msra.mxu0 0.0
    %306 = vmatprep.subr.mxu0 0.0
    %307 = vmatpush1.xpose.msra.mxu0 0.0
    %308 = vmatprep.subr.mxu0 0.0
    %309 = vmatpush1.xpose.msra.mxu0 0.0
    %310 = vmatprep.subr.mxu0 0.0
    %311 = vmatpush1.xpose.msra.mxu0 0.0
    %312 = vmatprep.subr.mxu0 0.0
    %313 = vmatpush1.xpose.msra.mxu0 0.0
    %314 = vmatprep.subr.mxu0 0.0
    %315 = vmatpush1.xpose.msra.mxu0 0.0
    %316 = vmatprep.subr.mxu0 0.0
    %317 = vmatpush1.xpose.msra.mxu0 0.0
    %318 = vmatprep.subr.mxu0 0.0
    %319 = vmatpush1.xpose.msra.mxu0 0.0
    %320 = vmatprep.subr.mxu0 0.0
    %321 = vmatpush1.xpose.msra.mxu0 0.0
    %322 = vmatprep.subr.mxu0 0.0
    %323 = vmatpush1.xpose.msra.mxu0 0.0
    %324 = vmatprep.subr.mxu0 0.0
    %325 = vmatpush1.xpose.msra.mxu0 0.0
    %326 = vmatprep.subr.mxu0 0.0
    %327 = vmatpush1.xpose.msra.mxu0 0.0
    %328 = vmatprep.subr.mxu0 0.0
    %329 = vmatpush1.xpose.msra.mxu0 0.0
    %330 = vmatprep.subr.mxu0 0.0
    %331 = vmatpush1.xpose.msra.mxu0 0.0
    %332 = vmatprep.mubr.f32.mxu0 0.0
    %333 = vmatmul.mubr.f32.gmra.mrb[0].mxu0 %v252
    %v334 = vpop.f32.mrb[0].mxu0
    %v335 = vadd.f32 0.0, %v334
    %v336 = vpop.f32.mrb[0].mxu0
    %337 = vmatprep.mubr.f32.mxu0 0.0
    %338 = vmatmul.mubr.f32.gmra.mrb[0].mxu0 %v254
    %v339 = vpop.f32.mrb[0].mxu0
    %v340 = vadd.f32 0.0, %v339
    %v341 = vpop.f32.mrb[0].mxu0
    %342 = vmatprep.mubr.f32.mxu0 0.0
    %343 = vmatmul.mubr.f32.gmra.mrb[0].mxu0 %v256
    %v344 = vpop.f32.mrb[0].mxu0
    %v345 = vadd.f32 0.0, %v344
    %v346 = vpop.f32.mrb[0].mxu0
    %347 = vmatprep.mubr.f32.mxu0 0.0
    %348 = vmatmul.mubr.f32.gmra.mrb[0].mxu0 %v258
    %v349 = vpop.f32.mrb[0].mxu0
    %v350 = vadd.f32 0.0, %v349
    %v351 = vpop.f32.mrb[0].mxu0
    %352 = vdwg.mxu0
    %353 = vrot.lane.b32.xlu0 %v220, 96
    %v354 = vpop.permute.xlu0 %353
    %355 = vrot.lane.b32.xlu0 %v222, 96
    %v356 = vpop.permute.xlu0 %355
    %357 = vrot.lane.b32.xlu0 %v224, 96
    %v358 = vpop.permute.xlu0 %357
    %359 = vrot.lane.b32.xlu0 %v226, 96
    %v360 = vpop.permute.xlu0 %359
    %v361 = vsel %vm251, %v220, 0
    %v363 = vsel %vm251, %v222, 0
    %v365 = vsel %vm251, %v224, 0
    %v367 = vsel %vm251, %v226, 0
    %v369 = vsel %vm251, %v354, 0
    %v371 = vsel %vm251, %v356, 0
    %v373 = vsel %vm251, %v358, 0
    %v375 = vsel %vm251, %v360, 0
    %377 = vmatprep.subr.mxu0 0.0
    %378 = vmatpush1.xpose.msra.mxu0 %v369
    %379 = vmatprep.subr.mxu0 0.0
    %380 = vmatpush1.xpose.msra.mxu0 %v371
    %381 = vmatprep.subr.mxu0 0.0
    %382 = vmatpush1.xpose.msra.mxu0 %v373
    %383 = vmatprep.subr.mxu0 0.0
    %384 = vmatpush1.xpose.msra.mxu0 %v375
    %385 = vmatprep.subr.mxu0 0.0
    %386 = vmatpush1.xpose.msra.mxu0 0.0
    %387 = vmatprep.subr.mxu0 0.0
    %388 = vmatpush1.xpose.msra.mxu0 0.0
    %389 = vmatprep.subr.mxu0 0.0
    %390 = vmatpush1.xpose.msra.mxu0 0.0
    %391 = vmatprep.subr.mxu0 0.0
    %392 = vmatpush1.xpose.msra.mxu0 0.0
    %393 = vmatprep.subr.mxu0 0.0
    %394 = vmatpush1.xpose.msra.mxu0 0.0
    %395 = vmatprep.subr.mxu0 0.0
    %396 = vmatpush1.xpose.msra.mxu0 0.0
    %397 = vmatprep.subr.mxu0 0.0
    %398 = vmatpush1.xpose.msra.mxu0 0.0
    %399 = vmatprep.subr.mxu0 0.0
    %400 = vmatpush1.xpose.msra.mxu0 0.0
    %401 = vmatprep.subr.mxu0 0.0
    %402 = vmatpush1.xpose.msra.mxu0 0.0
    %403 = vmatprep.subr.mxu0 0.0
    %404 = vmatpush1.xpose.msra.mxu0 0.0
    %405 = vmatprep.subr.mxu0 0.0
    %406 = vmatpush1.xpose.msra.mxu0 0.0
    %407 = vmatprep.subr.mxu0 0.0
    %408 = vmatpush1.xpose.msra.mxu0 0.0
    %409 = vmatprep.subr.mxu0 0.0
    %410 = vmatpush1.xpose.msra.mxu0 0.0
    %411 = vmatprep.subr.mxu0 0.0
    %412 = vmatpush1.xpose.msra.mxu0 0.0
    %413 = vmatprep.subr.mxu0 0.0
    %414 = vmatpush1.xpose.msra.mxu0 0.0
    %415 = vmatprep.subr.mxu0 0.0
    %416 = vmatpush1.xpose.msra.mxu0 0.0
    %417 = vmatprep.subr.mxu0 0.0
    %418 = vmatpush1.xpose.msra.mxu0 0.0
    %419 = vmatprep.subr.mxu0 0.0
    %420 = vmatpush1.xpose.msra.mxu0 0.0
    %421 = vmatprep.subr.mxu0 0.0
    %422 = vmatpush1.xpose.msra.mxu0 0.0
    %423 = vmatprep.subr.mxu0 0.0
    %424 = vmatpush1.xpose.msra.mxu0 0.0
    %425 = vmatprep.subr.mxu0 0.0
    %426 = vmatpush1.xpose.msra.mxu0 0.0
    %427 = vmatprep.subr.mxu0 0.0
    %428 = vmatpush1.xpose.msra.mxu0 0.0
    %429 = vmatprep.subr.mxu0 0.0
    %430 = vmatpush1.xpose.msra.mxu0 0.0
    %431 = vmatprep.subr.mxu0 0.0
    %432 = vmatpush1.xpose.msra.mxu0 0.0
    %433 = vmatprep.subr.mxu0 0.0
    %434 = vmatpush1.xpose.msra.mxu0 0.0
    %435 = vmatprep.subr.mxu0 0.0
    %436 = vmatpush1.xpose.msra.mxu0 0.0
    %437 = vmatprep.subr.mxu0 0.0
    %438 = vmatpush1.xpose.msra.mxu0 0.0
    %439 = vmatprep.subr.mxu0 0.0
    %440 = vmatpush1.xpose.msra.mxu0 0.0
    %441 = vmatprep.mubr.f32.mxu0 0.0
    %442 = vmatmul.mubr.f32.gmra.mrb[0].mxu0 %v361
    %v443 = vpop.f32.mrb[0].mxu0
    %v444 = vadd.f32 0.0, %v443
    %v445 = vpop.f32.mrb[0].mxu0
    %446 = vmatprep.mubr.f32.mxu0 0.0
    %447 = vmatmul.mubr.f32.gmra.mrb[0].mxu0 %v363
    %v448 = vpop.f32.mrb[0].mxu0
    %v449 = vadd.f32 0.0, %v448
    %v450 = vpop.f32.mrb[0].mxu0
    %451 = vmatprep.mubr.f32.mxu0 0.0
    %452 = vmatmul.mubr.f32.gmra.mrb[0].mxu0 %v365
    %v453 = vpop.f32.mrb[0].mxu0
    %v454 = vadd.f32 0.0, %v453
    %v455 = vpop.f32.mrb[0].mxu0
    %456 = vmatprep.mubr.f32.mxu0 0.0
    %457 = vmatmul.mubr.f32.gmra.mrb[0].mxu0 %v367
    %v458 = vpop.f32.mrb[0].mxu0
    %v459 = vadd.f32 0.0, %v458
    %v460 = vpop.f32.mrb[0].mxu0
    %461 = vdwg.mxu0
    %462 = vrot.lane.b32.xlu0 %v228, 96
    %v463 = vpop.permute.xlu0 %462
    %464 = vrot.lane.b32.xlu0 %v230, 96
    %v465 = vpop.permute.xlu0 %464
    %466 = vrot.lane.b32.xlu0 %v232, 96
    %v467 = vpop.permute.xlu0 %466
    %468 = vrot.lane.b32.xlu0 %v234, 96
    %v469 = vpop.permute.xlu0 %468
    %v470 = vsel %vm251, %v228, 0
    %v472 = vsel %vm251, %v230, 0
    %v474 = vsel %vm251, %v232, 0
    %v476 = vsel %vm251, %v234, 0
    %v478 = vsel %vm251, %v463, 0
    %v480 = vsel %vm251, %v465, 0
    %v482 = vsel %vm251, %v467, 0
    %v484 = vsel %vm251, %v469, 0
    %486 = vmatprep.subr.mxu0 0.0
    %487 = vmatpush1.xpose.msra.mxu0 %v478
    %488 = vmatprep.subr.mxu0 0.0
    %489 = vmatpush1.xpose.msra.mxu0 %v480
    %490 = vmatprep.subr.mxu0 0.0
    %491 = vmatpush1.xpose.msra.mxu0 %v482
    %492 = vmatprep.subr.mxu0 0.0
    %493 = vmatpush1.xpose.msra.mxu0 %v484
    %494 = vmatprep.subr.mxu0 0.0
    %495 = vmatpush1.xpose.msra.mxu0 0.0
    %496 = vmatprep.subr.mxu0 0.0
    %497 = vmatpush1.xpose.msra.mxu0 0.0
    %498 = vmatprep.subr.mxu0 0.0
    %499 = vmatpush1.xpose.msra.mxu0 0.0
    %500 = vmatprep.subr.mxu0 0.0
    %501 = vmatpush1.xpose.msra.mxu0 0.0
    %502 = vmatprep.subr.mxu0 0.0
    %503 = vmatpush1.xpose.msra.mxu0 0.0
    %504 = vmatprep.subr.mxu0 0.0
    %505 = vmatpush1.xpose.msra.mxu0 0.0
    %506 = vmatprep.subr.mxu0 0.0
    %507 = vmatpush1.xpose.msra.mxu0 0.0
    %508 = vmatprep.subr.mxu0 0.0
    %509 = vmatpush1.xpose.msra.mxu0 0.0
    %510 = vmatprep.subr.mxu0 0.0
    %511 = vmatpush1.xpose.msra.mxu0 0.0
    %512 = vmatprep.subr.mxu0 0.0
    %513 = vmatpush1.xpose.msra.mxu0 0.0
    %514 = vmatprep.subr.mxu0 0.0
    %515 = vmatpush1.xpose.msra.mxu0 0.0
    %516 = vmatprep.subr.mxu0 0.0
    %517 = vmatpush1.xpose.msra.mxu0 0.0
    %518 = vmatprep.subr.mxu0 0.0
    %519 = vmatpush1.xpose.msra.mxu0 0.0
    %520 = vmatprep.subr.mxu0 0.0
    %521 = vmatpush1.xpose.msra.mxu0 0.0
    %522 = vmatprep.subr.mxu0 0.0
    %523 = vmatpush1.xpose.msra.mxu0 0.0
    %524 = vmatprep.subr.mxu0 0.0
    %525 = vmatpush1.xpose.msra.mxu0 0.0
    %526 = vmatprep.subr.mxu0 0.0
    %527 = vmatpush1.xpose.msra.mxu0 0.0
    %528 = vmatprep.subr.mxu0 0.0
    %529 = vmatpush1.xpose.msra.mxu0 0.0
    %530 = vmatprep.subr.mxu0 0.0
    %531 = vmatpush1.xpose.msra.mxu0 0.0
    %532 = vmatprep.subr.mxu0 0.0
    %533 = vmatpush1.xpose.msra.mxu0 0.0
    %534 = vmatprep.subr.mxu0 0.0
    %535 = vmatpush1.xpose.msra.mxu0 0.0
    %536 = vmatprep.subr.mxu0 0.0
    %537 = vmatpush1.xpose.msra.mxu0 0.0
    %538 = vmatprep.subr.mxu0 0.0
    %539 = vmatpush1.xpose.msra.mxu0 0.0
    %540 = vmatprep.subr.mxu0 0.0
    %541 = vmatpush1.xpose.msra.mxu0 0.0
    %542 = vmatprep.subr.mxu0 0.0
    %543 = vmatpush1.xpose.msra.mxu0 0.0
    %544 = vmatprep.subr.mxu0 0.0
    %545 = vmatpush1.xpose.msra.mxu0 0.0
    %546 = vmatprep.subr.mxu0 0.0
    %547 = vmatpush1.xpose.msra.mxu0 0.0
    %548 = vmatprep.subr.mxu0 0.0
    %549 = vmatpush1.xpose.msra.mxu0 0.0
    %550 = vmatprep.mubr.f32.mxu0 0.0
    %551 = vmatmul.mubr.f32.gmra.mrb[0].mxu0 %v470
    %v552 = vpop.f32.mrb[0].mxu0
    %v553 = vadd.f32 0.0, %v552
    %v554 = vpop.f32.mrb[0].mxu0
    %555 = vmatprep.mubr.f32.mxu0 0.0
    %556 = vmatmul.mubr.f32.gmra.mrb[0].mxu0 %v472
    %v557 = vpop.f32.mrb[0].mxu0
    %v558 = vadd.f32 0.0, %v557
    %v559 = vpop.f32.mrb[0].mxu0
    %560 = vmatprep.mubr.f32.mxu0 0.0
    %561 = vmatmul.mubr.f32.gmra.mrb[0].mxu0 %v474
    %v562 = vpop.f32.mrb[0].mxu0
    %v563 = vadd.f32 0.0, %v562
    %v564 = vpop.f32.mrb[0].mxu0
    %565 = vmatprep.mubr.f32.mxu0 0.0
    %566 = vmatmul.mubr.f32.gmra.mrb[0].mxu0 %v476
    %v567 = vpop.f32.mrb[0].mxu0
    %v568 = vadd.f32 0.0, %v567
    %v569 = vpop.f32.mrb[0].mxu0
    %570 = vdwg.mxu0
    %571 = vrot.lane.b32.xlu0 %v236, 96
    %v572 = vpop.permute.xlu0 %571
    %573 = vrot.lane.b32.xlu0 %v238, 96
    %v574 = vpop.permute.xlu0 %573
    %575 = vrot.lane.b32.xlu0 %v240, 96
    %v576 = vpop.permute.xlu0 %575
    %577 = vrot.lane.b32.xlu0 %v242, 96
    %v578 = vpop.permute.xlu0 %577
    %v579 = vsel %vm251, %v236, 0
    %v581 = vsel %vm251, %v238, 0
    %v583 = vsel %vm251, %v240, 0
    %v585 = vsel %vm251, %v242, 0
    %v587 = vsel %vm251, %v572, 0
    %v589 = vsel %vm251, %v574, 0
    %v591 = vsel %vm251, %v576, 0
    %v593 = vsel %vm251, %v578, 0
    %595 = vmatprep.subr.mxu0 0.0
    %596 = vmatpush1.xpose.msra.mxu0 %v587
    %597 = vmatprep.subr.mxu0 0.0
    %598 = vmatpush1.xpose.msra.mxu0 %v589
    %599 = vmatprep.subr.mxu0 0.0
    %600 = vmatpush1.xpose.msra.mxu0 %v591
    %601 = vmatprep.subr.mxu0 0.0
    %602 = vmatpush1.xpose.msra.mxu0 %v593
    %603 = vmatprep.subr.mxu0 0.0
    %604 = vmatpush1.xpose.msra.mxu0 0.0
    %605 = vmatprep.subr.mxu0 0.0
    %606 = vmatpush1.xpose.msra.mxu0 0.0
    %607 = vmatprep.subr.mxu0 0.0
    %608 = vmatpush1.xpose.msra.mxu0 0.0
    %609 = vmatprep.subr.mxu0 0.0
    %610 = vmatpush1.xpose.msra.mxu0 0.0
    %611 = vmatprep.subr.mxu0 0.0
    %612 = vmatpush1.xpose.msra.mxu0 0.0
    %613 = vmatprep.subr.mxu0 0.0
    %614 = vmatpush1.xpose.msra.mxu0 0.0
    %615 = vmatprep.subr.mxu0 0.0
    %616 = vmatpush1.xpose.msra.mxu0 0.0
    %617 = vmatprep.subr.mxu0 0.0
    %618 = vmatpush1.xpose.msra.mxu0 0.0
    %619 = vmatprep.subr.mxu0 0.0
    %620 = vmatpush1.xpose.msra.mxu0 0.0
    %621 = vmatprep.subr.mxu0 0.0
    %622 = vmatpush1.xpose.msra.mxu0 0.0
    %623 = vmatprep.subr.mxu0 0.0
    %624 = vmatpush1.xpose.msra.mxu0 0.0
    %625 = vmatprep.subr.mxu0 0.0
    %626 = vmatpush1.xpose.msra.mxu0 0.0
    %627 = vmatprep.subr.mxu0 0.0
    %628 = vmatpush1.xpose.msra.mxu0 0.0
    %629 = vmatprep.subr.mxu0 0.0
    %630 = vmatpush1.xpose.msra.mxu0 0.0
    %631 = vmatprep.subr.mxu0 0.0
    %632 = vmatpush1.xpose.msra.mxu0 0.0
    %633 = vmatprep.subr.mxu0 0.0
    %634 = vmatpush1.xpose.msra.mxu0 0.0
    %635 = vmatprep.subr.mxu0 0.0
    %636 = vmatpush1.xpose.msra.mxu0 0.0
    %637 = vmatprep.subr.mxu0 0.0
    %638 = vmatpush1.xpose.msra.mxu0 0.0
    %639 = vmatprep.subr.mxu0 0.0
    %640 = vmatpush1.xpose.msra.mxu0 0.0
    %641 = vmatprep.subr.mxu0 0.0
    %642 = vmatpush1.xpose.msra.mxu0 0.0
    %643 = vmatprep.subr.mxu0 0.0
    %644 = vmatpush1.xpose.msra.mxu0 0.0
    %645 = vmatprep.subr.mxu0 0.0
    %646 = vmatpush1.xpose.msra.mxu0 0.0
    %647 = vmatprep.subr.mxu0 0.0
    %648 = vmatpush1.xpose.msra.mxu0 0.0
    %649 = vmatprep.subr.mxu0 0.0
    %650 = vmatpush1.xpose.msra.mxu0 0.0
    %651 = vmatprep.subr.mxu0 0.0
    %652 = vmatpush1.xpose.msra.mxu0 0.0
    %653 = vmatprep.subr.mxu0 0.0
    %654 = vmatpush1.xpose.msra.mxu0 0.0
    %655 = vmatprep.subr.mxu0 0.0
    %656 = vmatpush1.xpose.msra.mxu0 0.0
    %657 = vmatprep.subr.mxu0 0.0
    %658 = vmatpush1.xpose.msra.mxu0 0.0
    %659 = vmatprep.mubr.f32.mxu0 0.0
    %660 = vmatmul.mubr.f32.gmra.mrb[0].mxu0 %v579
    %v661 = vpop.f32.mrb[0].mxu0
    %v662 = vadd.f32 0.0, %v661
    %v663 = vpop.f32.mrb[0].mxu0
    %664 = vmatprep.mubr.f32.mxu0 0.0
    %665 = vmatmul.mubr.f32.gmra.mrb[0].mxu0 %v581
    %v666 = vpop.f32.mrb[0].mxu0
    %v667 = vadd.f32 0.0, %v666
    %v668 = vpop.f32.mrb[0].mxu0
    %669 = vmatprep.mubr.f32.mxu0 0.0
    %670 = vmatmul.mubr.f32.gmra.mrb[0].mxu0 %v583
    %v671 = vpop.f32.mrb[0].mxu0
    %v672 = vadd.f32 0.0, %v671
    %v673 = vpop.f32.mrb[0].mxu0
    %674 = vmatprep.mubr.f32.mxu0 0.0
    %675 = vmatmul.mubr.f32.gmra.mrb[0].mxu0 %v585
    %v676 = vpop.f32.mrb[0].mxu0
    %v677 = vadd.f32 0.0, %v676
    %v678 = vpop.f32.mrb[0].mxu0
    %679 = vdwg.mxu0
    %v680 = vmul.f32 %v335, 0.35355338
    %v681 = vmul.f32 %v340, 0.35355338
    %v682 = vmul.f32 %v345, 0.35355338
    %v683 = vmul.f32 %v350, 0.35355338
    %v684 = vmul.f32 %v444, 0.35355338
    %v685 = vmul.f32 %v449, 0.35355338
    %v686 = vmul.f32 %v454, 0.35355338
    %v687 = vmul.f32 %v459, 0.35355338
    %v688 = vmul.f32 %v553, 0.35355338
    %v689 = vmul.f32 %v558, 0.35355338
    %v690 = vmul.f32 %v563, 0.35355338
    %v691 = vmul.f32 %v568, 0.35355338
    %v692 = vmul.f32 %v662, 0.35355338
    %v693 = vmul.f32 %v667, 0.35355338
    %v694 = vmul.f32 %v672, 0.35355338
    %v695 = vmul.f32 %v677, 0.35355338
    %v696 = vadd.f32 %v680, %v19
    %v697 = vadd.f32 %v681, %v20
    %v698 = vadd.f32 %v682, %v21
    %v699 = vadd.f32 %v683, %v22
    %v700 = vadd.f32 %v684, %v19
    %v701 = vadd.f32 %v685, %v20
    %v702 = vadd.f32 %v686, %v21
    %v703 = vadd.f32 %v687, %v22
    %v704 = vadd.f32 %v688, %v19
    %v705 = vadd.f32 %v689, %v20
    %v706 = vadd.f32 %v690, %v21
    %v707 = vadd.f32 %v691, %v22
    %v708 = vadd.f32 %v692, %v19
    %v709 = vadd.f32 %v693, %v20
    %v710 = vadd.f32 %v694, %v21
    %v711 = vadd.f32 %v695, %v22
    %v712 = vsel %vm44, %v696, -inf
    %713 = vmax.xlane.f32.xlu0 %v712
    %v714 = vpop.xlane.xlu0 %713
    %v715 = vsel %vm44, %v697, -inf
    %716 = vmax.xlane.f32.xlu0 %v715
    %v717 = vpop.xlane.xlu0 %716
    %v718 = vsel %vm44, %v698, -inf
    %719 = vmax.xlane.f32.xlu0 %v718
    %v720 = vpop.xlane.xlu0 %719
    %v721 = vsel %vm44, %v699, -inf
    %722 = vmax.xlane.f32.xlu0 %v721
    %v723 = vpop.xlane.xlu0 %722
    %v724 = vsel %vm44, %v700, -inf
    %725 = vmax.xlane.f32.xlu0 %v724
    %v726 = vpop.xlane.xlu0 %725
    %v727 = vsel %vm44, %v701, -inf
    %728 = vmax.xlane.f32.xlu0 %v727
    %v729 = vpop.xlane.xlu0 %728
    %v730 = vsel %vm44, %v702, -inf
    %731 = vmax.xlane.f32.xlu0 %v730
    %v732 = vpop.xlane.xlu0 %731
    %v733 = vsel %vm44, %v703, -inf
    %734 = vmax.xlane.f32.xlu0 %v733
    %v735 = vpop.xlane.xlu0 %734
    %v736 = vsel %vm44, %v704, -inf
    %737 = vmax.xlane.f32.xlu0 %v736
    %v738 = vpop.xlane.xlu0 %737
    %v739 = vsel %vm44, %v705, -inf
    %740 = vmax.xlane.f32.xlu0 %v739
    %v741 = vpop.xlane.xlu0 %740
    %v742 = vsel %vm44, %v706, -inf
    %743 = vmax.xlane.f32.xlu0 %v742
    %v744 = vpop.xlane.xlu0 %743
    %v745 = vsel %vm44, %v707, -inf
    %746 = vmax.xlane.f32.xlu0 %v745
    %v747 = vpop.xlane.xlu0 %746
    %v748 = vsel %vm44, %v708, -inf
    %749 = vmax.xlane.f32.xlu0 %v748
    %v750 = vpop.xlane.xlu0 %749
    %v751 = vsel %vm44, %v709, -inf
    %752 = vmax.xlane.f32.xlu0 %v751
    %v753 = vpop.xlane.xlu0 %752
    %v754 = vsel %vm44, %v710, -inf
    %755 = vmax.xlane.f32.xlu0 %v754
    %v756 = vpop.xlane.xlu0 %755
    %v757 = vsel %vm44, %v711, -inf
    %758 = vmax.xlane.f32.xlu0 %v757
    %v759 = vpop.xlane.xlu0 %758
    %v760 = vsub.f32 %v696, %v714
    %v761 = vsub.f32 %v697, %v717
    %v762 = vsub.f32 %v698, %v720
    %v763 = vsub.f32 %v699, %v723
    %v764 = vsub.f32 %v700, %v726
    %v765 = vsub.f32 %v701, %v729
    %v766 = vsub.f32 %v702, %v732
    %v767 = vsub.f32 %v703, %v735
    %v768 = vsub.f32 %v704, %v738
    %v769 = vsub.f32 %v705, %v741
    %v770 = vsub.f32 %v706, %v744
    %v771 = vsub.f32 %v707, %v747
    %v772 = vsub.f32 %v708, %v750
    %v773 = vsub.f32 %v709, %v753
    %v774 = vsub.f32 %v710, %v756
    %v775 = vsub.f32 %v711, %v759
    %v776 = vmul.f32 %v760, 1.442695
    %v777 = vpow.pop %v776
    %v778 = vmul.f32 %v761, 1.442695
    %v779 = vpow.pop %v778
    %v780 = vmul.f32 %v762, 1.442695
    %v781 = vpow.pop %v780
    %v782 = vmul.f32 %v763, 1.442695
    %v783 = vpow.pop %v782
    %v784 = vmul.f32 %v764, 1.442695
    %v785 = vpow.pop %v784
    %v786 = vmul.f32 %v765, 1.442695
    %v787 = vpow.pop %v786
    %v788 = vmul.f32 %v766, 1.442695
    %v789 = vpow.pop %v788
    %v790 = vmul.f32 %v767, 1.442695
    %v791 = vpow.pop %v790
    %v792 = vmul.f32 %v768, 1.442695
    %v793 = vpow.pop %v792
    %v794 = vmul.f32 %v769, 1.442695
    %v795 = vpow.pop %v794
    %v796 = vmul.f32 %v770, 1.442695
    %v797 = vpow.pop %v796
    %v798 = vmul.f32 %v771, 1.442695
    %v799 = vpow.pop %v798
    %v800 = vmul.f32 %v772, 1.442695
    %v801 = vpow.pop %v800
    %v802 = vmul.f32 %v773, 1.442695
    %v803 = vpow.pop %v802
    %v804 = vmul.f32 %v774, 1.442695
    %v805 = vpow.pop %v804
    %v806 = vmul.f32 %v775, 1.442695
    %v807 = vpow.pop %v806
    %v808 = vsel %vm44, %v777, 0.0
    %809 = vadd.xlane.f32.xlu0 %v808
    %v810 = vpop.xlane.xlu0 %809
    %v811 = vsel %vm44, %v779, 0.0
    %812 = vadd.xlane.f32.xlu0 %v811
    %v813 = vpop.xlane.xlu0 %812
    %v814 = vsel %vm44, %v781, 0.0
    %815 = vadd.xlane.f32.xlu0 %v814
    %v816 = vpop.xlane.xlu0 %815
    %v817 = vsel %vm44, %v783, 0.0
    %818 = vadd.xlane.f32.xlu0 %v817
    %v819 = vpop.xlane.xlu0 %818
    %v820 = vsel %vm44, %v785, 0.0
    %821 = vadd.xlane.f32.xlu0 %v820
    %v822 = vpop.xlane.xlu0 %821
    %v823 = vsel %vm44, %v787, 0.0
    %824 = vadd.xlane.f32.xlu0 %v823
    %v825 = vpop.xlane.xlu0 %824
    %v826 = vsel %vm44, %v789, 0.0
    %827 = vadd.xlane.f32.xlu0 %v826
    %v828 = vpop.xlane.xlu0 %827
    %v829 = vsel %vm44, %v791, 0.0
    %830 = vadd.xlane.f32.xlu0 %v829
    %v831 = vpop.xlane.xlu0 %830
    %v832 = vsel %vm44, %v793, 0.0
    %833 = vadd.xlane.f32.xlu0 %v832
    %v834 = vpop.xlane.xlu0 %833
    %v835 = vsel %vm44, %v795, 0.0
    %836 = vadd.xlane.f32.xlu0 %v835
    %v837 = vpop.xlane.xlu0 %836
    %v838 = vsel %vm44, %v797, 0.0
    %839 = vadd.xlane.f32.xlu0 %v838
    %v840 = vpop.xlane.xlu0 %839
    %v841 = vsel %vm44, %v799, 0.0
    %842 = vadd.xlane.f32.xlu0 %v841
    %v843 = vpop.xlane.xlu0 %842
    %v844 = vsel %vm44, %v801, 0.0
    %845 = vadd.xlane.f32.xlu0 %v844
    %v846 = vpop.xlane.xlu0 %845
    %v847 = vsel %vm44, %v803, 0.0
    %848 = vadd.xlane.f32.xlu0 %v847
    %v849 = vpop.xlane.xlu0 %848
    %v850 = vsel %vm44, %v805, 0.0
    %851 = vadd.xlane.f32.xlu0 %v850
    %v852 = vpop.xlane.xlu0 %851
    %v853 = vsel %vm44, %v807, 0.0
    %854 = vadd.xlane.f32.xlu0 %v853
    %v855 = vpop.xlane.xlu0 %854
    %v856 = vrcp.pop %v810
    %v857 = vrcp.pop %v813
    %v858 = vrcp.pop %v816
    %v859 = vrcp.pop %v819
    %v860 = vrcp.pop %v822
    %v861 = vrcp.pop %v825
    %v862 = vrcp.pop %v828
    %v863 = vrcp.pop %v831
    %v864 = vrcp.pop %v834
    %v865 = vrcp.pop %v837
    %v866 = vrcp.pop %v840
    %v867 = vrcp.pop %v843
    %v868 = vrcp.pop %v846
    %v869 = vrcp.pop %v849
    %v870 = vrcp.pop %v852
    %v871 = vrcp.pop %v855
    %v872 = vmul.f32 %v777, %v856
    %v873 = vmul.f32 %v779, %v857
    %v874 = vmul.f32 %v781, %v858
    %v875 = vmul.f32 %v783, %v859
    %v876 = vmul.f32 %v785, %v860
    %v877 = vmul.f32 %v787, %v861
    %v878 = vmul.f32 %v789, %v862
    %v879 = vmul.f32 %v791, %v863
    %v880 = vmul.f32 %v793, %v864
    %v881 = vmul.f32 %v795, %v865
    %v882 = vmul.f32 %v797, %v866
    %v883 = vmul.f32 %v799, %v867
    %v884 = vmul.f32 %v801, %v868
    %v885 = vmul.f32 %v803, %v869
    %v886 = vmul.f32 %v805, %v870
    %v887 = vmul.f32 %v807, %v871
    %888 = vrot.lane.b32.xlu0 %v197, 64
    %v889 = vpop.permute.xlu0 %888
    %890 = vrot.lane.b32.xlu0 %v202, 64
    %v891 = vpop.permute.xlu0 %890
    %892 = vrot.lane.b32.xlu0 %v207, 64
    %v893 = vpop.permute.xlu0 %892
    %894 = vrot.lane.b32.xlu0 %v212, 64
    %v895 = vpop.permute.xlu0 %894
    %v901 = vsel %vm44, %v872, 0
    %v904 = vsel %vm44, %v873, 0
    %v907 = vsel %vm44, %v874, 0
    %v910 = vsel %vm44, %v875, 0
    %912 = vmatprep.subr.mxu0 0.0
    %913 = vmatpush1.msra.mxu0 %v889
    %914 = vmatprep.subr.mxu0 0.0
    %915 = vmatpush1.msra.mxu0 %v891
    %916 = vmatprep.subr.mxu0 0.0
    %917 = vmatpush1.msra.mxu0 %v893
    %918 = vmatprep.subr.mxu0 0.0
    %919 = vmatpush1.msra.mxu0 %v895
    %920 = vmatprep.subr.mxu0 0.0
    %921 = vmatpush1.msra.mxu0 0.0
    %922 = vmatprep.subr.mxu0 0.0
    %923 = vmatpush1.msra.mxu0 0.0
    %924 = vmatprep.subr.mxu0 0.0
    %925 = vmatpush1.msra.mxu0 0.0
    %926 = vmatprep.subr.mxu0 0.0
    %927 = vmatpush1.msra.mxu0 0.0
    %928 = vmatprep.subr.mxu0 0.0
    %929 = vmatpush1.msra.mxu0 0.0
    %930 = vmatprep.subr.mxu0 0.0
    %931 = vmatpush1.msra.mxu0 0.0
    %932 = vmatprep.subr.mxu0 0.0
    %933 = vmatpush1.msra.mxu0 0.0
    %934 = vmatprep.subr.mxu0 0.0
    %935 = vmatpush1.msra.mxu0 0.0
    %936 = vmatprep.subr.mxu0 0.0
    %937 = vmatpush1.msra.mxu0 0.0
    %938 = vmatprep.subr.mxu0 0.0
    %939 = vmatpush1.msra.mxu0 0.0
    %940 = vmatprep.subr.mxu0 0.0
    %941 = vmatpush1.msra.mxu0 0.0
    %942 = vmatprep.subr.mxu0 0.0
    %943 = vmatpush1.msra.mxu0 0.0
    %944 = vmatprep.subr.mxu0 0.0
    %945 = vmatpush1.msra.mxu0 0.0
    %946 = vmatprep.subr.mxu0 0.0
    %947 = vmatpush1.msra.mxu0 0.0
    %948 = vmatprep.subr.mxu0 0.0
    %949 = vmatpush1.msra.mxu0 0.0
    %950 = vmatprep.subr.mxu0 0.0
    %951 = vmatpush1.msra.mxu0 0.0
    %952 = vmatprep.subr.mxu0 0.0
    %953 = vmatpush1.msra.mxu0 0.0
    %954 = vmatprep.subr.mxu0 0.0
    %955 = vmatpush1.msra.mxu0 0.0
    %956 = vmatprep.subr.mxu0 0.0
    %957 = vmatpush1.msra.mxu0 0.0
    %958 = vmatprep.subr.mxu0 0.0
    %959 = vmatpush1.msra.mxu0 0.0
    %960 = vmatprep.subr.mxu0 0.0
    %961 = vmatpush1.msra.mxu0 0.0
    %962 = vmatprep.subr.mxu0 0.0
    %963 = vmatpush1.msra.mxu0 0.0
    %964 = vmatprep.subr.mxu0 0.0
    %965 = vmatpush1.msra.mxu0 0.0
    %966 = vmatprep.subr.mxu0 0.0
    %967 = vmatpush1.msra.mxu0 0.0
    %968 = vmatprep.subr.mxu0 0.0
    %969 = vmatpush1.msra.mxu0 0.0
    %970 = vmatprep.subr.mxu0 0.0
    %971 = vmatpush1.msra.mxu0 0.0
    %972 = vmatprep.subr.mxu0 0.0
    %973 = vmatpush1.msra.mxu0 0.0
    %974 = vmatprep.subr.mxu0 0.0
    %975 = vmatpush1.msra.mxu0 0.0
    %976 = vmatprep.mubr.f32.mxu0 0.0
    %977 = vmatmul.mubr.f32.gmra.mrb[0].mxu0 %v901
    %v978 = vpop.f32.mrb[0].mxu0
    %v979 = vadd.f32 0.0, %v978
    %v980 = vpop.f32.mrb[0].mxu0
    %981 = vmatprep.mubr.f32.mxu0 0.0
    %982 = vmatmul.mubr.f32.gmra.mrb[0].mxu0 %v904
    %v983 = vpop.f32.mrb[0].mxu0
    %v984 = vadd.f32 0.0, %v983
    %v985 = vpop.f32.mrb[0].mxu0
    %986 = vmatprep.mubr.f32.mxu0 0.0
    %987 = vmatmul.mubr.f32.gmra.mrb[0].mxu0 %v907
    %v988 = vpop.f32.mrb[0].mxu0
    %v989 = vadd.f32 0.0, %v988
    %v990 = vpop.f32.mrb[0].mxu0
    %991 = vmatprep.mubr.f32.mxu0 0.0
    %992 = vmatmul.mubr.f32.gmra.mrb[0].mxu0 %v910
    %v993 = vpop.f32.mrb[0].mxu0
    %v994 = vadd.f32 0.0, %v993
    %v995 = vpop.f32.mrb[0].mxu0
    %996 = vdwg.mxu0
    %997 = vrot.lane.b32.xlu0 %v220, 64
    %v998 = vpop.permute.xlu0 %997
    %999 = vrot.lane.b32.xlu0 %v222, 64
    %v1000 = vpop.permute.xlu0 %999
    %1001 = vrot.lane.b32.xlu0 %v224, 64
    %v1002 = vpop.permute.xlu0 %1001
    %1003 = vrot.lane.b32.xlu0 %v226, 64
    %v1004 = vpop.permute.xlu0 %1003
    %v1010 = vsel %vm44, %v876, 0
    %v1013 = vsel %vm44, %v877, 0
    %v1016 = vsel %vm44, %v878, 0
    %v1019 = vsel %vm44, %v879, 0
    %1021 = vmatprep.subr.mxu0 0.0
    %1022 = vmatpush1.msra.mxu0 %v998
    %1023 = vmatprep.subr.mxu0 0.0
    %1024 = vmatpush1.msra.mxu0 %v1000
    %1025 = vmatprep.subr.mxu0 0.0
    %1026 = vmatpush1.msra.mxu0 %v1002
    %1027 = vmatprep.subr.mxu0 0.0
    %1028 = vmatpush1.msra.mxu0 %v1004
    %1029 = vmatprep.subr.mxu0 0.0
    %1030 = vmatpush1.msra.mxu0 0.0
    %1031 = vmatprep.subr.mxu0 0.0
    %1032 = vmatpush1.msra.mxu0 0.0
    %1033 = vmatprep.subr.mxu0 0.0
    %1034 = vmatpush1.msra.mxu0 0.0
    %1035 = vmatprep.subr.mxu0 0.0
    %1036 = vmatpush1.msra.mxu0 0.0
    %1037 = vmatprep.subr.mxu0 0.0
    %1038 = vmatpush1.msra.mxu0 0.0
    %1039 = vmatprep.subr.mxu0 0.0
    %1040 = vmatpush1.msra.mxu0 0.0
    %1041 = vmatprep.subr.mxu0 0.0
    %1042 = vmatpush1.msra.mxu0 0.0
    %1043 = vmatprep.subr.mxu0 0.0
    %1044 = vmatpush1.msra.mxu0 0.0
    %1045 = vmatprep.subr.mxu0 0.0
    %1046 = vmatpush1.msra.mxu0 0.0
    %1047 = vmatprep.subr.mxu0 0.0
    %1048 = vmatpush1.msra.mxu0 0.0
    %1049 = vmatprep.subr.mxu0 0.0
    %1050 = vmatpush1.msra.mxu0 0.0
    %1051 = vmatprep.subr.mxu0 0.0
    %1052 = vmatpush1.msra.mxu0 0.0
    %1053 = vmatprep.subr.mxu0 0.0
    %1054 = vmatpush1.msra.mxu0 0.0
    %1055 = vmatprep.subr.mxu0 0.0
    %1056 = vmatpush1.msra.mxu0 0.0
    %1057 = vmatprep.subr.mxu0 0.0
    %1058 = vmatpush1.msra.mxu0 0.0
    %1059 = vmatprep.subr.mxu0 0.0
    %1060 = vmatpush1.msra.mxu0 0.0
    %1061 = vmatprep.subr.mxu0 0.0
    %1062 = vmatpush1.msra.mxu0 0.0
    %1063 = vmatprep.subr.mxu0 0.0
    %1064 = vmatpush1.msra.mxu0 0.0
    %1065 = vmatprep.subr.mxu0 0.0
    %1066 = vmatpush1.msra.mxu0 0.0
    %1067 = vmatprep.subr.mxu0 0.0
    %1068 = vmatpush1.msra.mxu0 0.0
    %1069 = vmatprep.subr.mxu0 0.0
    %1070 = vmatpush1.msra.mxu0 0.0
    %1071 = vmatprep.subr.mxu0 0.0
    %1072 = vmatpush1.msra.mxu0 0.0
    %1073 = vmatprep.subr.mxu0 0.0
    %1074 = vmatpush1.msra.mxu0 0.0
    %1075 = vmatprep.subr.mxu0 0.0
    %1076 = vmatpush1.msra.mxu0 0.0
    %1077 = vmatprep.subr.mxu0 0.0
    %1078 = vmatpush1.msra.mxu0 0.0
    %1079 = vmatprep.subr.mxu0 0.0
    %1080 = vmatpush1.msra.mxu0 0.0
    %1081 = vmatprep.subr.mxu0 0.0
    %1082 = vmatpush1.msra.mxu0 0.0
    %1083 = vmatprep.subr.mxu0 0.0
    %1084 = vmatpush1.msra.mxu0 0.0
    %1085 = vmatprep.mubr.f32.mxu0 0.0
    %1086 = vmatmul.mubr.f32.gmra.mrb[0].mxu0 %v1010
    %v1087 = vpop.f32.mrb[0].mxu0
    %v1088 = vadd.f32 0.0, %v1087
    %v1089 = vpop.f32.mrb[0].mxu0
    %1090 = vmatprep.mubr.f32.mxu0 0.0
    %1091 = vmatmul.mubr.f32.gmra.mrb[0].mxu0 %v1013
    %v1092 = vpop.f32.mrb[0].mxu0
    %v1093 = vadd.f32 0.0, %v1092
    %v1094 = vpop.f32.mrb[0].mxu0
    %1095 = vmatprep.mubr.f32.mxu0 0.0
    %1096 = vmatmul.mubr.f32.gmra.mrb[0].mxu0 %v1016
    %v1097 = vpop.f32.mrb[0].mxu0
    %v1098 = vadd.f32 0.0, %v1097
    %v1099 = vpop.f32.mrb[0].mxu0
    %1100 = vmatprep.mubr.f32.mxu0 0.0
    %1101 = vmatmul.mubr.f32.gmra.mrb[0].mxu0 %v1019
    %v1102 = vpop.f32.mrb[0].mxu0
    %v1103 = vadd.f32 0.0, %v1102
    %v1104 = vpop.f32.mrb[0].mxu0
    %1105 = vdwg.mxu0
    %1106 = vrot.lane.b32.xlu0 %v228, 64
    %v1107 = vpop.permute.xlu0 %1106
    %1108 = vrot.lane.b32.xlu0 %v230, 64
    %v1109 = vpop.permute.xlu0 %1108
    %1110 = vrot.lane.b32.xlu0 %v232, 64
    %v1111 = vpop.permute.xlu0 %1110
    %1112 = vrot.lane.b32.xlu0 %v234, 64
    %v1113 = vpop.permute.xlu0 %1112
    %v1119 = vsel %vm44, %v880, 0
    %v1122 = vsel %vm44, %v881, 0
    %v1125 = vsel %vm44, %v882, 0
    %v1128 = vsel %vm44, %v883, 0
    %1130 = vmatprep.subr.mxu0 0.0
    %1131 = vmatpush1.msra.mxu0 %v1107
    %1132 = vmatprep.subr.mxu0 0.0
    %1133 = vmatpush1.msra.mxu0 %v1109
    %1134 = vmatprep.subr.mxu0 0.0
    %1135 = vmatpush1.msra.mxu0 %v1111
    %1136 = vmatprep.subr.mxu0 0.0
    %1137 = vmatpush1.msra.mxu0 %v1113
    %1138 = vmatprep.subr.mxu0 0.0
    %1139 = vmatpush1.msra.mxu0 0.0
    %1140 = vmatprep.subr.mxu0 0.0
    %1141 = vmatpush1.msra.mxu0 0.0
    %1142 = vmatprep.subr.mxu0 0.0
    %1143 = vmatpush1.msra.mxu0 0.0
    %1144 = vmatprep.subr.mxu0 0.0
    %1145 = vmatpush1.msra.mxu0 0.0
    %1146 = vmatprep.subr.mxu0 0.0
    %1147 = vmatpush1.msra.mxu0 0.0
    %1148 = vmatprep.subr.mxu0 0.0
    %1149 = vmatpush1.msra.mxu0 0.0
    %1150 = vmatprep.subr.mxu0 0.0
    %1151 = vmatpush1.msra.mxu0 0.0
    %1152 = vmatprep.subr.mxu0 0.0
    %1153 = vmatpush1.msra.mxu0 0.0
    %1154 = vmatprep.subr.mxu0 0.0
    %1155 = vmatpush1.msra.mxu0 0.0
    %1156 = vmatprep.subr.mxu0 0.0
    %1157 = vmatpush1.msra.mxu0 0.0
    %1158 = vmatprep.subr.mxu0 0.0
    %1159 = vmatpush1.msra.mxu0 0.0
    %1160 = vmatprep.subr.mxu0 0.0
    %1161 = vmatpush1.msra.mxu0 0.0
    %1162 = vmatprep.subr.mxu0 0.0
    %1163 = vmatpush1.msra.mxu0 0.0
    %1164 = vmatprep.subr.mxu0 0.0
    %1165 = vmatpush1.msra.mxu0 0.0
    %1166 = vmatprep.subr.mxu0 0.0
    %1167 = vmatpush1.msra.mxu0 0.0
    %1168 = vmatprep.subr.mxu0 0.0
    %1169 = vmatpush1.msra.mxu0 0.0
    %1170 = vmatprep.subr.mxu0 0.0
    %1171 = vmatpush1.msra.mxu0 0.0
    %1172 = vmatprep.subr.mxu0 0.0
    %1173 = vmatpush1.msra.mxu0 0.0
    %1174 = vmatprep.subr.mxu0 0.0
    %1175 = vmatpush1.msra.mxu0 0.0
    %1176 = vmatprep.subr.mxu0 0.0
    %1177 = vmatpush1.msra.mxu0 0.0
    %1178 = vmatprep.subr.mxu0 0.0
    %1179 = vmatpush1.msra.mxu0 0.0
    %1180 = vmatprep.subr.mxu0 0.0
    %1181 = vmatpush1.msra.mxu0 0.0
    %1182 = vmatprep.subr.mxu0 0.0
    %1183 = vmatpush1.msra.mxu0 0.0
    %1184 = vmatprep.subr.mxu0 0.0
    %1185 = vmatpush1.msra.mxu0 0.0
    %1186 = vmatprep.subr.mxu0 0.0
    %1187 = vmatpush1.msra.mxu0 0.0
    %1188 = vmatprep.subr.mxu0 0.0
    %1189 = vmatpush1.msra.mxu0 0.0
    %1190 = vmatprep.subr.mxu0 0.0
    %1191 = vmatpush1.msra.mxu0 0.0
    %1192 = vmatprep.subr.mxu0 0.0
    %1193 = vmatpush1.msra.mxu0 0.0
    %1194 = vmatprep.mubr.f32.mxu0 0.0
    %1195 = vmatmul.mubr.f32.gmra.mrb[0].mxu0 %v1119
    %v1196 = vpop.f32.mrb[0].mxu0
    %v1197 = vadd.f32 0.0, %v1196
    %v1198 = vpop.f32.mrb[0].mxu0
    %1199 = vmatprep.mubr.f32.mxu0 0.0
    %1200 = vmatmul.mubr.f32.gmra.mrb[0].mxu0 %v1122
    %v1201 = vpop.f32.mrb[0].mxu0
    %v1202 = vadd.f32 0.0, %v1201
    %v1203 = vpop.f32.mrb[0].mxu0
    %1204 = vmatprep.mubr.f32.mxu0 0.0
    %1205 = vmatmul.mubr.f32.gmra.mrb[0].mxu0 %v1125
    %v1206 = vpop.f32.mrb[0].mxu0
    %v1207 = vadd.f32 0.0, %v1206
    %v1208 = vpop.f32.mrb[0].mxu0
    %1209 = vmatprep.mubr.f32.mxu0 0.0
    %1210 = vmatmul.mubr.f32.gmra.mrb[0].mxu0 %v1128
    %v1211 = vpop.f32.mrb[0].mxu0
    %v1212 = vadd.f32 0.0, %v1211
    %v1213 = vpop.f32.mrb[0].mxu0
    %1214 = vdwg.mxu0
    %1215 = vrot.lane.b32.xlu0 %v236, 64
    %v1216 = vpop.permute.xlu0 %1215
    %1217 = vrot.lane.b32.xlu0 %v238, 64
    %v1218 = vpop.permute.xlu0 %1217
    %1219 = vrot.lane.b32.xlu0 %v240, 64
    %v1220 = vpop.permute.xlu0 %1219
    %1221 = vrot.lane.b32.xlu0 %v242, 64
    %v1222 = vpop.permute.xlu0 %1221
    %v1228 = vsel %vm44, %v884, 0
    %v1231 = vsel %vm44, %v885, 0
    %v1234 = vsel %vm44, %v886, 0
    %v1237 = vsel %vm44, %v887, 0
    %1239 = vmatprep.subr.mxu0 0.0
    %1240 = vmatpush1.msra.mxu0 %v1216
    %1241 = vmatprep.subr.mxu0 0.0
    %1242 = vmatpush1.msra.mxu0 %v1218
    %1243 = vmatprep.subr.mxu0 0.0
    %1244 = vmatpush1.msra.mxu0 %v1220
    %1245 = vmatprep.subr.mxu0 0.0
    %1246 = vmatpush1.msra.mxu0 %v1222
    %1247 = vmatprep.subr.mxu0 0.0
    %1248 = vmatpush1.msra.mxu0 0.0
    %1249 = vmatprep.subr.mxu0 0.0
    %1250 = vmatpush1.msra.mxu0 0.0
    %1251 = vmatprep.subr.mxu0 0.0
    %1252 = vmatpush1.msra.mxu0 0.0
    %1253 = vmatprep.subr.mxu0 0.0
    %1254 = vmatpush1.msra.mxu0 0.0
    %1255 = vmatprep.subr.mxu0 0.0
    %1256 = vmatpush1.msra.mxu0 0.0
    %1257 = vmatprep.subr.mxu0 0.0
    %1258 = vmatpush1.msra.mxu0 0.0
    %1259 = vmatprep.subr.mxu0 0.0
    %1260 = vmatpush1.msra.mxu0 0.0
    %1261 = vmatprep.subr.mxu0 0.0
    %1262 = vmatpush1.msra.mxu0 0.0
    %1263 = vmatprep.subr.mxu0 0.0
    %1264 = vmatpush1.msra.mxu0 0.0
    %1265 = vmatprep.subr.mxu0 0.0
    %1266 = vmatpush1.msra.mxu0 0.0
    %1267 = vmatprep.subr.mxu0 0.0
    %1268 = vmatpush1.msra.mxu0 0.0
    %1269 = vmatprep.subr.mxu0 0.0
    %1270 = vmatpush1.msra.mxu0 0.0
    %1271 = vmatprep.subr.mxu0 0.0
    %1272 = vmatpush1.msra.mxu0 0.0
    %1273 = vmatprep.subr.mxu0 0.0
    %1274 = vmatpush1.msra.mxu0 0.0
    %1275 = vmatprep.subr.mxu0 0.0
    %1276 = vmatpush1.msra.mxu0 0.0
    %1277 = vmatprep.subr.mxu0 0.0
    %1278 = vmatpush1.msra.mxu0 0.0
    %1279 = vmatprep.subr.mxu0 0.0
    %1280 = vmatpush1.msra.mxu0 0.0
    %1281 = vmatprep.subr.mxu0 0.0
    %1282 = vmatpush1.msra.mxu0 0.0
    %1283 = vmatprep.subr.mxu0 0.0
    %1284 = vmatpush1.msra.mxu0 0.0
    %1285 = vmatprep.subr.mxu0 0.0
    %1286 = vmatpush1.msra.mxu0 0.0
    %1287 = vmatprep.subr.mxu0 0.0
    %1288 = vmatpush1.msra.mxu0 0.0
    %1289 = vmatprep.subr.mxu0 0.0
    %1290 = vmatpush1.msra.mxu0 0.0
    %1291 = vmatprep.subr.mxu0 0.0
    %1292 = vmatpush1.msra.mxu0 0.0
    %1293 = vmatprep.subr.mxu0 0.0
    %1294 = vmatpush1.msra.mxu0 0.0
    %1295 = vmatprep.subr.mxu0 0.0
    %1296 = vmatpush1.msra.mxu0 0.0
    %1297 = vmatprep.subr.mxu0 0.0
    %1298 = vmatpush1.msra.mxu0 0.0
    %1299 = vmatprep.subr.mxu0 0.0
    %1300 = vmatpush1.msra.mxu0 0.0
    %1301 = vmatprep.subr.mxu0 0.0
    %1302 = vmatpush1.msra.mxu0 0.0
    %1303 = vmatprep.mubr.f32.mxu0 0.0
    %1304 = vmatmul.mubr.f32.gmra.mrb[0].mxu0 %v1228
    %v1305 = vpop.f32.mrb[0].mxu0
    %v1306 = vadd.f32 0.0, %v1305
    %v1307 = vpop.f32.mrb[0].mxu0
    %1308 = vmatprep.mubr.f32.mxu0 0.0
    %1309 = vmatmul.mubr.f32.gmra.mrb[0].mxu0 %v1231
    %v1310 = vpop.f32.mrb[0].mxu0
    %v1311 = vadd.f32 0.0, %v1310
    %v1312 = vpop.f32.mrb[0].mxu0
    %1313 = vmatprep.mubr.f32.mxu0 0.0
    %1314 = vmatmul.mubr.f32.gmra.mrb[0].mxu0 %v1234
    %v1315 = vpop.f32.mrb[0].mxu0
    %v1316 = vadd.f32 0.0, %v1315
    %v1317 = vpop.f32.mrb[0].mxu0
    %1318 = vmatprep.mubr.f32.mxu0 0.0
    %1319 = vmatmul.mubr.f32.gmra.mrb[0].mxu0 %v1237
    %v1320 = vpop.f32.mrb[0].mxu0
    %v1321 = vadd.f32 0.0, %v1320
    %v1322 = vpop.f32.mrb[0].mxu0
    %1323 = vdwg.mxu0
    %1328 = vrot.lane.b32.xlu0 %v1088, 8
    %v1329 = vpop.permute.xlu0 %1328
    %1330 = vrot.lane.b32.xlu0 %v1093, 8
    %v1331 = vpop.permute.xlu0 %1330
    %1332 = vrot.lane.b32.xlu0 %v1098, 8
    %v1333 = vpop.permute.xlu0 %1332
    %1334 = vrot.lane.b32.xlu0 %v1103, 8
    %v1335 = vpop.permute.xlu0 %1334
    %1344 = vrot.lane.b32.xlu0 %v1197, 16
    %v1345 = vpop.permute.xlu0 %1344
    %1346 = vrot.lane.b32.xlu0 %v1202, 16
    %v1347 = vpop.permute.xlu0 %1346
    %1348 = vrot.lane.b32.xlu0 %v1207, 16
    %v1349 = vpop.permute.xlu0 %1348
    %1350 = vrot.lane.b32.xlu0 %v1212, 16
    %v1351 = vpop.permute.xlu0 %1350
    %1360 = vrot.lane.b32.xlu0 %v1306, 24
    %v1361 = vpop.permute.xlu0 %1360
    %1362 = vrot.lane.b32.xlu0 %v1311, 24
    %v1363 = vpop.permute.xlu0 %1362
    %1364 = vrot.lane.b32.xlu0 %v1316, 24
    %v1365 = vpop.permute.xlu0 %1364
    %1366 = vrot.lane.b32.xlu0 %v1321, 24
    %v1367 = vpop.permute.xlu0 %1366
    %v1372 = vsel %vm251, %v979, %v1329
    %v1373 = vsel %vm251, %v984, %v1331
    %v1374 = vsel %vm251, %v989, %v1333
    %v1375 = vsel %vm251, %v994, %v1335
    %vm1376 = vcmask 130048
    %v1377 = vsel %vm1376, %v1372, %v1345
    %v1378 = vsel %vm1376, %v1373, %v1347
    %v1379 = vsel %vm1376, %v1374, %v1349
    %v1380 = vsel %vm1376, %v1375, %v1351
    %vm1381 = vcmask 195584
    %v1382 = vsel %vm1381, %v1377, %v1361
    %v1383 = vsel %vm1381, %v1378, %v1363
    %v1384 = vsel %vm1381, %v1379, %v1365
    %v1385 = vsel %vm1381, %v1380, %v1367
    %v1386 = vlaneseq
    %v1387 = vshrl.u32 %v1386, 7
    %v1388 = vsub.s32 1, %v1387
    %v1389 = vrot.slane %v43, %v1388
    %v1391 = vsel %vm44, %v1382, 0
    %v1394 = vsel %vm44, %v1383, 0
    %v1397 = vsel %vm44, %v1384, 0
    %v1400 = vsel %vm44, %v1385, 0
    %1402 = vmatprep.subr.mxu0 0.0
    %1403 = vmatpush1.msra.mxu0 %v27
    %1404 = vmatprep.subr.mxu0 0.0
    %1405 = vmatpush1.msra.mxu0 %v28
    %1406 = vmatprep.subr.mxu0 0.0
    %1407 = vmatpush1.msra.mxu0 %v29
    %1408 = vmatprep.subr.mxu0 0.0
    %1409 = vmatpush1.msra.mxu0 %v30
    %1410 = vmatprep.subr.mxu0 0.0
    %1411 = vmatpush1.msra.mxu0 0.0
    %1412 = vmatprep.subr.mxu0 0.0
    %1413 = vmatpush1.msra.mxu0 0.0
    %1414 = vmatprep.subr.mxu0 0.0
    %1415 = vmatpush1.msra.mxu0 0.0
    %1416 = vmatprep.subr.mxu0 0.0
    %1417 = vmatpush1.msra.mxu0 0.0
    %1418 = vmatprep.subr.mxu0 0.0
    %1419 = vmatpush1.msra.mxu0 0.0
    %1420 = vmatprep.subr.mxu0 0.0
    %1421 = vmatpush1.msra.mxu0 0.0
    %1422 = vmatprep.subr.mxu0 0.0
    %1423 = vmatpush1.msra.mxu0 0.0
    %1424 = vmatprep.subr.mxu0 0.0
    %1425 = vmatpush1.msra.mxu0 0.0
    %1426 = vmatprep.subr.mxu0 0.0
    %1427 = vmatpush1.msra.mxu0 0.0
    %1428 = vmatprep.subr.mxu0 0.0
    %1429 = vmatpush1.msra.mxu0 0.0
    %1430 = vmatprep.subr.mxu0 0.0
    %1431 = vmatpush1.msra.mxu0 0.0
    %1432 = vmatprep.subr.mxu0 0.0
    %1433 = vmatpush1.msra.mxu0 0.0
    %1434 = vmatprep.subr.mxu0 0.0
    %1435 = vmatpush1.msra.mxu0 0.0
    %1436 = vmatprep.subr.mxu0 0.0
    %1437 = vmatpush1.msra.mxu0 0.0
    %1438 = vmatprep.subr.mxu0 0.0
    %1439 = vmatpush1.msra.mxu0 0.0
    %1440 = vmatprep.subr.mxu0 0.0
    %1441 = vmatpush1.msra.mxu0 0.0
    %1442 = vmatprep.subr.mxu0 0.0
    %1443 = vmatpush1.msra.mxu0 0.0
    %1444 = vmatprep.subr.mxu0 0.0
    %1445 = vmatpush1.msra.mxu0 0.0
    %1446 = vmatprep.subr.mxu0 0.0
    %1447 = vmatpush1.msra.mxu0 0.0
    %1448 = vmatprep.subr.mxu0 0.0
    %1449 = vmatpush1.msra.mxu0 0.0
    %1450 = vmatprep.subr.mxu0 0.0
    %1451 = vmatpush1.msra.mxu0 0.0
    %1452 = vmatprep.subr.mxu0 0.0
    %1453 = vmatpush1.msra.mxu0 0.0
    %1454 = vmatprep.subr.mxu0 0.0
    %1455 = vmatpush1.msra.mxu0 0.0
    %1456 = vmatprep.subr.mxu0 0.0
    %1457 = vmatpush1.msra.mxu0 0.0
    %1458 = vmatprep.subr.mxu0 0.0
    %1459 = vmatpush1.msra.mxu0 0.0
    %1460 = vmatprep.subr.mxu0 0.0
    %1461 = vmatpush1.msra.mxu0 0.0
    %1462 = vmatprep.subr.mxu0 0.0
    %1463 = vmatpush1.msra.mxu0 0.0
    %1464 = vmatprep.subr.mxu0 0.0
    %1465 = vmatpush1.msra.mxu0 0.0
    %1466 = vmatprep.mubr.f32.mxu0 0.0
    %1467 = vmatmul.mubr.f32.gmra.mrb[0].mxu0 %v1391
    %v1468 = vpop.f32.mrb[0].mxu0
    %v1469 = vadd.f32 %v1389, %v1468
    %v1470 = vpop.f32.mrb[0].mxu0
    %1471 = vmatprep.mubr.f32.mxu0 0.0
    %1472 = vmatmul.mubr.f32.gmra.mrb[0].mxu0 %v1394
    %v1473 = vpop.f32.mrb[0].mxu0
    %v1474 = vadd.f32 %v1389, %v1473
    %v1475 = vpop.f32.mrb[0].mxu0
    %1476 = vmatprep.mubr.f32.mxu0 0.0
    %1477 = vmatmul.mubr.f32.gmra.mrb[0].mxu0 %v1397
    %v1478 = vpop.f32.mrb[0].mxu0
    %v1479 = vadd.f32 %v1389, %v1478
    %v1480 = vpop.f32.mrb[0].mxu0
    %1481 = vmatprep.mubr.f32.mxu0 0.0
    %1482 = vmatmul.mubr.f32.gmra.mrb[0].mxu0 %v1400
    %v1483 = vpop.f32.mrb[0].mxu0
    %v1484 = vadd.f32 %v1389, %v1483
    %v1485 = vpop.f32.mrb[0].mxu0
    %1486 = vdwg.mxu0
    %v1487 = vadd.f32 %v15, %v1469
    %v1488 = vadd.f32 %v16, %v1474
    %v1489 = vadd.f32 %v17, %v1479
    %v1490 = vadd.f32 %v18, %v1484
    %v1491 = vsel %vm44, %v1487, 0.0
    %1492 = vadd.xlane.f32.xlu0 %v1491
    %v1493 = vpop.xlane.xlu0 %1492
    %v1494 = vsel %vm44, %v1488, 0.0
    %1495 = vadd.xlane.f32.xlu0 %v1494
    %v1496 = vpop.xlane.xlu0 %1495
    %v1497 = vsel %vm44, %v1489, 0.0
    %1498 = vadd.xlane.f32.xlu0 %v1497
    %v1499 = vpop.xlane.xlu0 %1498
    %v1500 = vsel %vm44, %v1490, 0.0
    %1501 = vadd.xlane.f32.xlu0 %v1500
    %v1502 = vpop.xlane.xlu0 %1501
    %v1503 = vmul.f32 %v1493, %v57
    %v1504 = vmul.f32 %v1496, %v57
    %v1505 = vmul.f32 %v1499, %v57
    %v1506 = vmul.f32 %v1502, %v57
    %v1507 = vsub.f32 %v1487, %v1503
    %v1508 = vsub.f32 %v1488, %v1504
    %v1509 = vsub.f32 %v1489, %v1505
    %v1510 = vsub.f32 %v1490, %v1506
    %v1511 = vmul.f32 %v1507, %v1507
    %v1512 = vmul.f32 %v1508, %v1508
    %v1513 = vmul.f32 %v1509, %v1509
    %v1514 = vmul.f32 %v1510, %v1510
    %v1515 = vsel %vm44, %v1511, 0.0
    %1516 = vadd.xlane.f32.xlu0 %v1515
    %v1517 = vpop.xlane.xlu0 %1516
    %v1518 = vsel %vm44, %v1512, 0.0
    %1519 = vadd.xlane.f32.xlu0 %v1518
    %v1520 = vpop.xlane.xlu0 %1519
    %v1521 = vsel %vm44, %v1513, 0.0
    %1522 = vadd.xlane.f32.xlu0 %v1521
    %v1523 = vpop.xlane.xlu0 %1522
    %v1524 = vsel %vm44, %v1514, 0.0
    %1525 = vadd.xlane.f32.xlu0 %v1524
    %v1526 = vpop.xlane.xlu0 %1525
    %v1527 = vmul.f32 %v1517, %v57
    %v1528 = vmul.f32 %v1520, %v57
    %v1529 = vmul.f32 %v1523, %v57
    %v1530 = vmul.f32 %v1526, %v57
    %v1531 = vadd.f32 %v1527, 1e-05
    %v1532 = vadd.f32 %v1528, 1e-05
    %v1533 = vadd.f32 %v1529, 1e-05
    %v1534 = vadd.f32 %v1530, 1e-05
    %v1535 = vrsqrt.pop %v1531
    %v1536 = vrsqrt.pop %v1532
    %v1537 = vrsqrt.pop %v1533
    %v1538 = vrsqrt.pop %v1534
    %v1539 = vmul.f32 %v1507, %v1535
    %v1540 = vmul.f32 %v1508, %v1536
    %v1541 = vmul.f32 %v1509, %v1537
    %v1542 = vmul.f32 %v1510, %v1538
    %v1543 = vlaneseq
    %v1544 = vshrl.u32 %v1543, 7
    %v1545 = vsub.s32 6, %v1544
    %v1546 = vrot.slane %v43, %v1545
    %v1547 = vmul.f32 %v1539, %v1546
    %v1548 = vmul.f32 %v1540, %v1546
    %v1549 = vmul.f32 %v1541, %v1546
    %v1550 = vmul.f32 %v1542, %v1546
    %v1551 = vlaneseq
    %v1552 = vshrl.u32 %v1551, 7
    %v1553 = vsub.s32 7, %v1552
    %v1554 = vrot.slane %v43, %v1553
    %v1555 = vadd.f32 %v1547, %v1554
    %v1556 = vadd.f32 %v1548, %v1554
    %v1557 = vadd.f32 %v1549, %v1554
    %v1558 = vadd.f32 %v1550, %v1554
    %v1559 = vlaneseq
    %v1560 = vshrl.u32 %v1559, 7
    %v1561 = vsub.s32 2, %v1560
    %v1562 = vrot.slane %v43, %v1561
    %v1564 = vsel %vm44, %v1555, 0
    %v1567 = vsel %vm44, %v1556, 0
    %v1570 = vsel %vm44, %v1557, 0
    %v1573 = vsel %vm44, %v1558, 0
    %1575 = vmatprep.subr.mxu0 0.0
    %1576 = vmatpush1.msra.mxu0 %v31
    %1577 = vmatprep.subr.mxu0 0.0
    %1578 = vmatpush1.msra.mxu0 %v32
    %1579 = vmatprep.subr.mxu0 0.0
    %1580 = vmatpush1.msra.mxu0 %v33
    %1581 = vmatprep.subr.mxu0 0.0
    %1582 = vmatpush1.msra.mxu0 %v34
    %1583 = vmatprep.subr.mxu0 0.0
    %1584 = vmatpush1.msra.mxu0 0.0
    %1585 = vmatprep.subr.mxu0 0.0
    %1586 = vmatpush1.msra.mxu0 0.0
    %1587 = vmatprep.subr.mxu0 0.0
    %1588 = vmatpush1.msra.mxu0 0.0
    %1589 = vmatprep.subr.mxu0 0.0
    %1590 = vmatpush1.msra.mxu0 0.0
    %1591 = vmatprep.subr.mxu0 0.0
    %1592 = vmatpush1.msra.mxu0 0.0
    %1593 = vmatprep.subr.mxu0 0.0
    %1594 = vmatpush1.msra.mxu0 0.0
    %1595 = vmatprep.subr.mxu0 0.0
    %1596 = vmatpush1.msra.mxu0 0.0
    %1597 = vmatprep.subr.mxu0 0.0
    %1598 = vmatpush1.msra.mxu0 0.0
    %1599 = vmatprep.subr.mxu0 0.0
    %1600 = vmatpush1.msra.mxu0 0.0
    %1601 = vmatprep.subr.mxu0 0.0
    %1602 = vmatpush1.msra.mxu0 0.0
    %1603 = vmatprep.subr.mxu0 0.0
    %1604 = vmatpush1.msra.mxu0 0.0
    %1605 = vmatprep.subr.mxu0 0.0
    %1606 = vmatpush1.msra.mxu0 0.0
    %1607 = vmatprep.subr.mxu0 0.0
    %1608 = vmatpush1.msra.mxu0 0.0
    %1609 = vmatprep.subr.mxu0 0.0
    %1610 = vmatpush1.msra.mxu0 0.0
    %1611 = vmatprep.subr.mxu0 0.0
    %1612 = vmatpush1.msra.mxu0 0.0
    %1613 = vmatprep.subr.mxu0 0.0
    %1614 = vmatpush1.msra.mxu0 0.0
    %1615 = vmatprep.subr.mxu0 0.0
    %1616 = vmatpush1.msra.mxu0 0.0
    %1617 = vmatprep.subr.mxu0 0.0
    %1618 = vmatpush1.msra.mxu0 0.0
    %1619 = vmatprep.subr.mxu0 0.0
    %1620 = vmatpush1.msra.mxu0 0.0
    %1621 = vmatprep.subr.mxu0 0.0
    %1622 = vmatpush1.msra.mxu0 0.0
    %1623 = vmatprep.subr.mxu0 0.0
    %1624 = vmatpush1.msra.mxu0 0.0
    %1625 = vmatprep.subr.mxu0 0.0
    %1626 = vmatpush1.msra.mxu0 0.0
    %1627 = vmatprep.subr.mxu0 0.0
    %1628 = vmatpush1.msra.mxu0 0.0
    %1629 = vmatprep.subr.mxu0 0.0
    %1630 = vmatpush1.msra.mxu0 0.0
    %1631 = vmatprep.subr.mxu0 0.0
    %1632 = vmatpush1.msra.mxu0 0.0
    %1633 = vmatprep.subr.mxu0 0.0
    %1634 = vmatpush1.msra.mxu0 0.0
    %1635 = vmatprep.subr.mxu0 0.0
    %1636 = vmatpush1.msra.mxu0 0.0
    %1637 = vmatprep.subr.mxu0 0.0
    %1638 = vmatpush1.msra.mxu0 0.0
    %1639 = vmatprep.mubr.f32.mxu0 0.0
    %1640 = vmatmul.mubr.f32.gmra.mrb[0].mxu0 %v1564
    %v1641 = vpop.f32.mrb[0].mxu0
    %v1642 = vadd.f32 %v1562, %v1641
    %v1643 = vpop.f32.mrb[0].mxu0
    %1644 = vmatprep.mubr.f32.mxu0 0.0
    %1645 = vmatmul.mubr.f32.gmra.mrb[0].mxu0 %v1567
    %v1646 = vpop.f32.mrb[0].mxu0
    %v1647 = vadd.f32 %v1562, %v1646
    %v1648 = vpop.f32.mrb[0].mxu0
    %1649 = vmatprep.mubr.f32.mxu0 0.0
    %1650 = vmatmul.mubr.f32.gmra.mrb[0].mxu0 %v1570
    %v1651 = vpop.f32.mrb[0].mxu0
    %v1652 = vadd.f32 %v1562, %v1651
    %v1653 = vpop.f32.mrb[0].mxu0
    %1654 = vmatprep.mubr.f32.mxu0 0.0
    %1655 = vmatmul.mubr.f32.gmra.mrb[0].mxu0 %v1573
    %v1656 = vpop.f32.mrb[0].mxu0
    %v1657 = vadd.f32 %v1562, %v1656
    %v1658 = vpop.f32.mrb[0].mxu0
    %1659 = vdwg.mxu0
    %v1660 = vmax.f32 %v1642, 0.0
    %v1661 = vmax.f32 %v1647, 0.0
    %v1662 = vmax.f32 %v1652, 0.0
    %v1663 = vmax.f32 %v1657, 0.0
    %v1664 = vlaneseq
    %v1665 = vshrl.u32 %v1664, 7
    %v1666 = vsub.s32 3, %v1665
    %v1667 = vrot.slane %v43, %v1666
    %vm1668 = vcmask 523264
    %v1670 = vsel %vm1668, %v1660, 0
    %v1673 = vsel %vm1668, %v1661, 0
    %v1676 = vsel %vm1668, %v1662, 0
    %v1679 = vsel %vm1668, %v1663, 0
    %1681 = vmatprep.subr.mxu0 0.0
    %1682 = vmatpush1.msra.mxu0 %v35
    %1683 = vmatprep.subr.mxu0 0.0
    %1684 = vmatpush1.msra.mxu0 %v36
    %1685 = vmatprep.subr.mxu0 0.0
    %1686 = vmatpush1.msra.mxu0 %v37
    %1687 = vmatprep.subr.mxu0 0.0
    %1688 = vmatpush1.msra.mxu0 %v38
    %1689 = vmatprep.subr.mxu0 0.0
    %1690 = vmatpush1.msra.mxu0 %v39
    %1691 = vmatprep.subr.mxu0 0.0
    %1692 = vmatpush1.msra.mxu0 %v40
    %1693 = vmatprep.subr.mxu0 0.0
    %1694 = vmatpush1.msra.mxu0 %v41
    %1695 = vmatprep.subr.mxu0 0.0
    %1696 = vmatpush1.msra.mxu0 %v42
    %1697 = vmatprep.subr.mxu0 0.0
    %1698 = vmatpush1.msra.mxu0 0.0
    %1699 = vmatprep.subr.mxu0 0.0
    %1700 = vmatpush1.msra.mxu0 0.0
    %1701 = vmatprep.subr.mxu0 0.0
    %1702 = vmatpush1.msra.mxu0 0.0
    %1703 = vmatprep.subr.mxu0 0.0
    %1704 = vmatpush1.msra.mxu0 0.0
    %1705 = vmatprep.subr.mxu0 0.0
    %1706 = vmatpush1.msra.mxu0 0.0
    %1707 = vmatprep.subr.mxu0 0.0
    %1708 = vmatpush1.msra.mxu0 0.0
    %1709 = vmatprep.subr.mxu0 0.0
    %1710 = vmatpush1.msra.mxu0 0.0
    %1711 = vmatprep.subr.mxu0 0.0
    %1712 = vmatpush1.msra.mxu0 0.0
    %1713 = vmatprep.subr.mxu0 0.0
    %1714 = vmatpush1.msra.mxu0 0.0
    %1715 = vmatprep.subr.mxu0 0.0
    %1716 = vmatpush1.msra.mxu0 0.0
    %1717 = vmatprep.subr.mxu0 0.0
    %1718 = vmatpush1.msra.mxu0 0.0
    %1719 = vmatprep.subr.mxu0 0.0
    %1720 = vmatpush1.msra.mxu0 0.0
    %1721 = vmatprep.subr.mxu0 0.0
    %1722 = vmatpush1.msra.mxu0 0.0
    %1723 = vmatprep.subr.mxu0 0.0
    %1724 = vmatpush1.msra.mxu0 0.0
    %1725 = vmatprep.subr.mxu0 0.0
    %1726 = vmatpush1.msra.mxu0 0.0
    %1727 = vmatprep.subr.mxu0 0.0
    %1728 = vmatpush1.msra.mxu0 0.0
    %1729 = vmatprep.subr.mxu0 0.0
    %1730 = vmatpush1.msra.mxu0 0.0
    %1731 = vmatprep.subr.mxu0 0.0
    %1732 = vmatpush1.msra.mxu0 0.0
    %1733 = vmatprep.subr.mxu0 0.0
    %1734 = vmatpush1.msra.mxu0 0.0
    %1735 = vmatprep.subr.mxu0 0.0
    %1736 = vmatpush1.msra.mxu0 0.0
    %1737 = vmatprep.subr.mxu0 0.0
    %1738 = vmatpush1.msra.mxu0 0.0
    %1739 = vmatprep.subr.mxu0 0.0
    %1740 = vmatpush1.msra.mxu0 0.0
    %1741 = vmatprep.subr.mxu0 0.0
    %1742 = vmatpush1.msra.mxu0 0.0
    %1743 = vmatprep.subr.mxu0 0.0
    %1744 = vmatpush1.msra.mxu0 0.0
    %1745 = vmatprep.mubr.f32.mxu0 0.0
    %1746 = vmatmul.mubr.f32.gmra.mrb[0].mxu0 %v1670
    %v1747 = vpop.f32.mrb[0].mxu0
    %v1748 = vadd.f32 %v1667, %v1747
    %v1749 = vpop.f32.mrb[0].mxu0
    %1750 = vmatprep.mubr.f32.mxu0 0.0
    %1751 = vmatmul.mubr.f32.gmra.mrb[0].mxu0 %v1673
    %v1752 = vpop.f32.mrb[0].mxu0
    %v1753 = vadd.f32 %v1667, %v1752
    %v1754 = vpop.f32.mrb[0].mxu0
    %1755 = vmatprep.mubr.f32.mxu0 0.0
    %1756 = vmatmul.mubr.f32.gmra.mrb[0].mxu0 %v1676
    %v1757 = vpop.f32.mrb[0].mxu0
    %v1758 = vadd.f32 %v1667, %v1757
    %v1759 = vpop.f32.mrb[0].mxu0
    %1760 = vmatprep.mubr.f32.mxu0 0.0
    %1761 = vmatmul.mubr.f32.gmra.mrb[0].mxu0 %v1679
    %v1762 = vpop.f32.mrb[0].mxu0
    %v1763 = vadd.f32 %v1667, %v1762
    %v1764 = vpop.f32.mrb[0].mxu0
    %1765 = vdwg.mxu0
    %v1766 = vadd.f32 %v1487, %v1748
    %v1767 = vadd.f32 %v1488, %v1753
    %v1768 = vadd.f32 %v1489, %v1758
    %v1769 = vadd.f32 %v1490, %v1763
    %1770 = vst.msk [vmem:[#allocation2] sm:$0xff] %vm44, %v1766
    %1771 = vst.msk [vmem:[#allocation2 + $0x8] sm:$0xff] %vm44, %v1767
    %1772 = vst.msk [vmem:[#allocation2 + $0x10] sm:$0xff] %vm44, %v1768
    %1773 = vst.msk [vmem:[#allocation2 + $0x18] sm:$0xff] %vm44, %v1769
    // Predicated region
    $region14: #{run.1} parent=1 // pred_check
      _
    $region15: #{run.1} parent=1 // pred_check_branch
      %1775 = sbr.rel (0) target = $region17
    $region16: #{run.1} parent=1 // pred_region
      %s1777 = ssub.s32 512, 512
      %1778 = vsyncadd [#allocation3], %s1777
      %s1779 = sshll.u32 [#allocation2], 4
      %s1780 = int_to_ptr.vmem [resolvable:$true] %s1779
      %1785 = dma.vmem_to_hbm [thread:$0]  %s1780, 512, %s3, [#allocation3], 128, 128, 8
    $region17: #{run.1} parent=1 // pred_fallthru
      _
    // Predicated region
    $region18: #{run.1} parent=1 // pred_check
      _
    $region19: #{run.1} parent=1 // pred_check_branch
      %1787 = sbr.rel (0) target = $region21
    $region20: #{run.1} parent=1 // pred_region
      %1788 = dma.done [#allocation3], 512
    $region21: #{run.1} parent=1 // pred_fallthru
      _
    %1789 = vsyncpa [#allocation3], 1

</llo_original>
